<compile_context>
chip_gen: v7x
topology: tpu7x:2x2x1
jax: 0.10.0
libtpu: 0.0.40
codegen_flags: <defaults>
</compile_context>

<pallas_src>
import functools

import jax
import jax.numpy as jnp
from jax.experimental import pallas as pl
from jax.experimental.pallas import tpu as pltpu


BN_EPS = 1e-3


def fused_add_conv_bn_kernel(xa_ref, xb_ref, w_ref, gamma_ref, beta_ref, o_ref,
                             *, hw_valid):
    # elementwise add in f32 (VPU), single cast to bf16 for the MXU
    x = (xa_ref[...] + xb_ref[...]).astype(jnp.bfloat16)     # (C_in, HW)

    # 1x1 conv == channel-mixing matmul (MXU), accumulate in f32
    y = jnp.dot(w_ref[...], x, preferred_element_type=jnp.float32)  # (C_blk, HW) f32

    # BatchNorm2d training-mode batch statistics (per output channel).
    s1 = jnp.sum(y, axis=1, keepdims=True)                    # (C_blk, 1)
    s2 = jnp.sum(y * y, axis=1, keepdims=True)                # (C_blk, 1)
    inv_n = jnp.float32(1.0 / hw_valid)
    mean = s1 * inv_n
    var = s2 * inv_n - mean * mean                            # biased variance
    inv_std = jax.lax.rsqrt(var + BN_EPS)

    # fused per-channel affine: out = y * scale + shift
    scale = inv_std * gamma_ref[...]
    shift = beta_ref[...] - mean * scale
    o_ref[...] = (y * scale + shift).astype(o_ref.dtype)


def fused_add_conv_bn(x138, x129, weight_bf16, gamma, beta):
    """x138, x129: (1, C_in, H, W) f32; weight_bf16: (C_out, C_in) bf16;
    gamma/beta: (C_out,) f32. Returns (1, C_out, H, W) f32."""
    n, c_in, h, w = x138.shape
    assert n == 1, "kernel written for N=1 (as in the reference module)"
    c_out = weight_bf16.shape[0]
    hw = h * w

    # free (contiguous) reshapes — no data movement
    xa = x138.reshape(c_in, hw)
    xb = x129.reshape(c_in, hw)
    g = gamma.reshape(c_out, 1)
    b = beta.reshape(c_out, 1)

    # 2-way split over output channels: uses both TensorCores on v7x,
    # negligible overhead on single-TC chips.
    n_blk = 2
    assert c_out % n_blk == 0 and (c_out // n_blk) % 8 == 0
    c_blk = c_out // n_blk

    bytes_accessed = (
        2 * c_in * hw * 4          # xa, xb (f32)
        + c_out * c_in * 2         # weight (bf16)
        + 2 * c_out * 4            # gamma, beta (f32)
        + c_out * hw * 4           # output (f32)
    )
    cost = pl.CostEstimate(
        flops=2 * c_out * c_in * hw,
        transcendentals=c_out,     # rsqrt per output channel
        bytes_accessed=bytes_accessed,
    )

    out = pl.pallas_call(
        functools.partial(fused_add_conv_bn_kernel, hw_valid=hw),
        out_shape=jax.ShapeDtypeStruct((c_out, hw), jnp.float32),
        grid=(n_blk,),
        in_specs=[
            pl.BlockSpec((c_in, hw), lambda i: (0, 0)),
            pl.BlockSpec((c_in, hw), lambda i: (0, 0)),
            pl.BlockSpec((c_blk, c_in), lambda i: (i, 0)),
            pl.BlockSpec((c_blk, 1), lambda i: (i, 0)),
            pl.BlockSpec((c_blk, 1), lambda i: (i, 0)),
        ],
        out_specs=pl.BlockSpec((c_blk, hw), lambda i: (i, 0)),
        compiler_params=pltpu.CompilerParams(
            dimension_semantics=("parallel",),
            vmem_limit_bytes=8 << 20,
        ),
        cost_estimate=cost,
    )(xa, xb, weight_bf16, g, b)

    # metadata-only reshape back to NCHW
    return out.reshape(n, c_out, h, w)


if __name__ == "__main__":
    key = jax.random.PRNGKey(0)
    k1, k2, k3 = jax.random.split(key, 3)

    N, C_IN, H, W = 1, 112, 14, 14
    C_OUT = 672

    # inputs (same shapes as the PyTorch module's x138 / x129)
    x138 = jax.random.normal(k1, (N, C_IN, H, W), dtype=jnp.float32)
    x129 = jax.random.normal(k2, (N, C_IN, H, W), dtype=jnp.float32)

    # deterministic parameter init
    # Conv2d(112, 672, 1x1, bias=False): weight (672, 112, 1, 1) -> (672, 112)
    fan_in = C_IN  # 1x1 kernel
    bound = 1.0 / (fan_in ** 0.5)
    conv_w = jax.random.uniform(
        k3, (C_OUT, C_IN), dtype=jnp.float32, minval=-bound, maxval=bound
    )
    # pre-convert the weight to bf16 ONCE at init (no per-call cast)
    conv_w_bf16 = conv_w.astype(jnp.bfloat16)
    # BatchNorm2d(672): weight=1, bias=0 (PyTorch default init)
    bn_gamma = jnp.ones((C_OUT,), dtype=jnp.float32)
    bn_beta = jnp.zeros((C_OUT,), dtype=jnp.float32)

    y = fused_add_conv_bn(x138, x129, conv_w_bf16, bn_gamma, bn_beta)
    y = jax.block_until_ready(y)

    assert y.shape == (N, C_OUT, H, W), y.shape
    assert jnp.all(jnp.isfinite(y))

    # sanity: training-mode BN output has ~zero mean / ~unit std per channel
    yc = y.reshape(C_OUT, H * W)
    assert jnp.max(jnp.abs(jnp.mean(yc, axis=1))) < 1e-2
    assert jnp.max(jnp.abs(jnp.std(yc, axis=1) - 1.0)) < 5e-2

    print("KERNEL_OK")
</pallas_src>

<mosaic_0001>
module attributes {stable_mosaic.version = 11 : i64} {
  func.func @fused_add_conv_bn_kernel(%arg0: i32, %arg1: memref<112x196xf32, #tpu.memory_space<vmem>>, %arg2: memref<112x196xf32, #tpu.memory_space<vmem>>, %arg3: memref<336x112xbf16, #tpu.memory_space<vmem>>, %arg4: memref<336x1xf32, #tpu.memory_space<vmem>>, %arg5: memref<336x1xf32, #tpu.memory_space<vmem>>, %arg6: memref<336x196xf32, #tpu.memory_space<vmem>>) attributes {dimension_semantics = [#tpu.dimension_semantics<parallel>], iteration_bounds = array<i64: 2>, scalar_prefetch = 0 : i64, scratch_operands = 0 : i64, tpu.core_type = #tpu.core_type<tc>, window_params = [{pipeline_mode = #tpu.pipeline_mode<synchronous>, transform_indices = @transform_0, window_bounds = array<i64: 112, 196>}, {pipeline_mode = #tpu.pipeline_mode<synchronous>, transform_indices = @transform_1, window_bounds = array<i64: 112, 196>}, {transform_indices = @transform_2, window_bounds = array<i64: 336, 112>}, {transform_indices = @transform_3, window_bounds = array<i64: 336, 1>}, {transform_indices = @transform_4, window_bounds = array<i64: 336, 1>}, {transform_indices = @transform_5, window_bounds = array<i64: 336, 196>}]} {
    %c0 = arith.constant 0 : index
    %c0_0 = arith.constant 0 : index
    %0 = vector.load %arg1[%c0, %c0_0] : memref<112x196xf32, #tpu.memory_space<vmem>>, vector<112x196xf32>
    %c0_1 = arith.constant 0 : index
    %c0_2 = arith.constant 0 : index
    %1 = vector.load %arg2[%c0_1, %c0_2] : memref<112x196xf32, #tpu.memory_space<vmem>>, vector<112x196xf32>
    %2 = arith.addf %0, %1 : vector<112x196xf32>
    %3 = arith.truncf %2 : vector<112x196xf32> to vector<112x196xbf16>
    %c0_3 = arith.constant 0 : index
    %c0_4 = arith.constant 0 : index
    %4 = vector.load %arg3[%c0_3, %c0_4] : memref<336x112xbf16, #tpu.memory_space<vmem>>, vector<336x112xbf16>
    %cst = arith.constant dense<0.000000e+00> : vector<336x196xf32>
    %5 = tpu.matmul %4, %3, %cst {dimension_numbers = #tpu.dot_dimension_numbers<[1], [0], [0], [1], [0, 0, 1, 1], [], []>} : vector<336x112xbf16>, vector<112x196xbf16>, vector<336x196xf32> -> vector<336x196xf32>
    %cst_5 = arith.constant dense<0.000000e+00> : vector<336xf32>
    %6 = vector.multi_reduction <add>, %5, %cst_5 [1] : vector<336x196xf32> to vector<336xf32>
    %7 = vector.shape_cast %6 : vector<336xf32> to vector<336x1xf32>
    %8 = arith.mulf %5, %5 : vector<336x196xf32>
    %cst_6 = arith.constant dense<0.000000e+00> : vector<336xf32>
    %9 = vector.multi_reduction <add>, %8, %cst_6 [1] : vector<336x196xf32> to vector<336xf32>
    %10 = vector.shape_cast %9 : vector<336xf32> to vector<336x1xf32>
    %cst_7 = arith.constant 0.00510204071 : f32
    %11 = vector.broadcast %cst_7 : f32 to vector<336x1xf32>
    %12 = arith.mulf %7, %11 : vector<336x1xf32>
    %cst_8 = arith.constant 0.00510204071 : f32
    %13 = vector.broadcast %cst_8 : f32 to vector<336x1xf32>
    %14 = arith.mulf %10, %13 : vector<336x1xf32>
    %15 = arith.mulf %12, %12 : vector<336x1xf32>
    %16 = arith.subf %14, %15 : vector<336x1xf32>
    %cst_9 = arith.constant 1.000000e-03 : f32
    %17 = vector.broadcast %cst_9 : f32 to vector<336x1xf32>
    %18 = arith.addf %16, %17 : vector<336x1xf32>
    %19 = math.rsqrt %18 : vector<336x1xf32>
    %c0_10 = arith.constant 0 : index
    %c0_11 = arith.constant 0 : index
    %20 = vector.load %arg4[%c0_10, %c0_11] : memref<336x1xf32, #tpu.memory_space<vmem>>, vector<336x1xf32>
    %21 = arith.mulf %19, %20 : vector<336x1xf32>
    %c0_12 = arith.constant 0 : index
    %c0_13 = arith.constant 0 : index
    %22 = vector.load %arg5[%c0_12, %c0_13] : memref<336x1xf32, #tpu.memory_space<vmem>>, vector<336x1xf32>
    %23 = arith.mulf %12, %21 : vector<336x1xf32>
    %24 = arith.subf %22, %23 : vector<336x1xf32>
    %25 = vector.broadcast %21 : vector<336x1xf32> to vector<336x196xf32>
    %26 = arith.mulf %5, %25 : vector<336x196xf32>
    %27 = vector.broadcast %24 : vector<336x1xf32> to vector<336x196xf32>
    %28 = arith.addf %26, %27 : vector<336x196xf32>
    %c0_14 = arith.constant 0 : index
    %c0_15 = arith.constant 0 : index
    %29 = vector.load %arg6[%c0_14, %c0_15] : memref<336x196xf32, #tpu.memory_space<vmem>>, vector<336x196xf32>
    tpu.vector_store %arg6[%c0_14, %c0_15], %28 {strides = array<i32>} : memref<336x196xf32, #tpu.memory_space<vmem>>, vector<336x196xf32>,
    return
  }
  func.func @transform_0(%arg0: i32) -> (i32, i32) {
    %c0_i32 = arith.constant 0 : i32
    %c0_i32_0 = arith.constant 0 : i32
    %c0_i32_1 = arith.constant 0 : i32
    return %c0_i32, %c0_i32_0 : i32, i32
  }
  func.func @transform_1(%arg0: i32) -> (i32, i32) {
    %c0_i32 = arith.constant 0 : i32
    %c0_i32_0 = arith.constant 0 : i32
    %c0_i32_1 = arith.constant 0 : i32
    return %c0_i32, %c0_i32_0 : i32, i32
  }
  func.func @transform_2(%arg0: i32) -> (i32, i32) {
    %c0_i32 = arith.constant 0 : i32
    %c0_i32_0 = arith.constant 0 : i32
    return %arg0, %c0_i32 : i32, i32
  }
  func.func @transform_3(%arg0: i32) -> (i32, i32) {
    %c0_i32 = arith.constant 0 : i32
    %c0_i32_0 = arith.constant 0 : i32
    return %arg0, %c0_i32 : i32, i32
  }
  func.func @transform_4(%arg0: i32) -> (i32, i32) {
    %c0_i32 = arith.constant 0 : i32
    %c0_i32_0 = arith.constant 0 : i32
    return %arg0, %c0_i32 : i32, i32
  }
  func.func @transform_5(%arg0: i32) -> (i32, i32) {
    %c0_i32 = arith.constant 0 : i32
    %c0_i32_0 = arith.constant 0 : i32
    return %arg0, %c0_i32 : i32, i32
  }
}

</mosaic_0001>

<llo_original>
// kernel: tpu_custom_call.1
$region0: #{tpu_custom_call.1}
  #allocation0 [shape = 'u32[]', space=smem, size = 0x4, offset = 0x4, fixed_abs, tag = 'smem constant byte address 0x4 - core index']
  #allocation1 [shape = 'u32[144,128]{1,0:T(1,128)}', space=vmem, size = 0x12000, scoped, tag = 'internal scratch']
  %s0 = inlined_call_operand.vmem [shape: f32[112,196], index: 0, kind: input, shape index: {}]
  %s1 = inlined_call_operand.vmem [shape: f32[112,196], index: 1, kind: input, shape index: {}]
  %s2 = inlined_call_operand.vmem [shape: bf16[672,112], index: 2, kind: input, shape index: {}]
  %s3 = inlined_call_operand.vmem [shape: f32[672,1], index: 3, kind: input, shape index: {}]
  %s4 = inlined_call_operand.vmem [shape: f32[672,1], index: 4, kind: input, shape index: {}]
  %s5 = inlined_call_operand.vmem [shape: f32[672,196], index: 5, kind: output, shape index: {}]
  %s6 = sld [smem:[#allocation0]]
  $region53: #{tpu_custom_call.1} parent=0
    _
  %s8 = ssub.s32 1, %s6
  %s9 = scalar_select 0, %s8, %s6
  loop: start=0, step=1, limit=4
  $region2: #{tpu_custom_call.1} parent=0 // loop_pre_header
    _
  $region3: #{tpu_custom_call.1} parent=0 // loop_header
    %s11 = sphi 0, %s15
    %p12 = scmp.ge.s32.totalorder %s11, 4
    %s19 = sphi 0, %s19
    %s21 = sphi 0, %s19
    %s22 = sphi 0, %s21
    %s36 = sphi 0, %s22
    %s40 = sphi 0, %s40
    %s42 = sphi 0, %s40
    %s43 = sphi 0, %s42
    %s57 = sphi 0, %s43
    %s63 = sphi 0, %s65
    %s66 = sphi 0, %s63
    %s67 = sphi 0, %s66
    %s83 = sphi 0, %s67
    %s89 = sphi 0, %s91
    %s92 = sphi 0, %s89
    %s93 = sphi 0, %s92
    %s109 = sphi 0, %s93
    %s115 = sphi 0, %s117
    %s118 = sphi 0, %s115
    %s119 = sphi 0, %s118
    %s135 = sphi 0, %s119
    %s141 = sphi 0, %s143
    %s144 = sphi 0, %s141
    %s145 = sphi 0, %s144
    %s161 = sphi 0, %s145
  $region4: #{tpu_custom_call.1} parent=0 // loop_header_branch
    %14 = sbr.rel (%p12) target = $region8
  $region5: #{tpu_custom_call.1} parent=0 // loop_body
    %s16 = ssub.s32 %s11, 1
    %s17 = ssub.s32 %s11, 2
    %s18 = sadd.s32 %s11, 1
    %s20 = sadd.s32 %s19, 1
    %p23 = scmp.eq.s32.totalorder %s11, 1
    %p24 = scmp.ne.s32.totalorder %s19, %s21
    %p25 = scmp.eq.s32.totalorder %s11, 0
    %p26 = por %p24, %p25
    %p27 = scmp.ne.s32.totalorder %s19, %s21
    %p28 = scmp.eq.s32.totalorder %s16, 1
    %p29 = por %p27, %p28
    %p30 = scmp.ne.s32.totalorder %s21, %s22
    %p31 = scmp.eq.s32.totalorder %s16, 0
    %p32 = por %p30, %p31
    %p33 = scmp.ne.s32.totalorder %s21, %s22
    %p34 = scmp.eq.s32.totalorder %s17, 1
    %p35 = por %p33, %p34
    %p37 = scmp.ne.s32.totalorder %s22, %s36
    %p38 = scmp.eq.s32.totalorder %s17, 0
    %p39 = por %p37, %p38
    %s41 = sadd.s32 %s40, 1
    %p44 = scmp.eq.s32.totalorder %s11, 1
    %p45 = scmp.ne.s32.totalorder %s40, %s42
    %p46 = scmp.eq.s32.totalorder %s11, 0
    %p47 = por %p45, %p46
    %p48 = scmp.ne.s32.totalorder %s40, %s42
    %p49 = scmp.eq.s32.totalorder %s16, 1
    %p50 = por %p48, %p49
    %p51 = scmp.ne.s32.totalorder %s42, %s43
    %p52 = scmp.eq.s32.totalorder %s16, 0
    %p53 = por %p51, %p52
    %p54 = scmp.ne.s32.totalorder %s42, %s43
    %p55 = scmp.eq.s32.totalorder %s17, 1
    %p56 = por %p54, %p55
    %p58 = scmp.ne.s32.totalorder %s43, %s57
    %p59 = scmp.eq.s32.totalorder %s17, 0
    %p60 = por %p58, %p59
    %s61 = ssub.s32 %s11, %s18
    %p62 = scmp.eq.s32.totalorder %s61, 0
    %s64 = sadd.s32 %s63, 1
    %s65 = scalar_select %p62, %s63, %s64
    %p68 = pneg %p62
    %p69 = scmp.eq.s32.totalorder %s11, 1
    %p70 = por %p68, %p69
    %p71 = scmp.ne.s32.totalorder %s63, %s66
    %p72 = scmp.eq.s32.totalorder %s11, 0
    %p73 = por %p71, %p72
    %p74 = scmp.ne.s32.totalorder %s63, %s66
    %p75 = scmp.eq.s32.totalorder %s16, 1
    %p76 = por %p74, %p75
    %p77 = scmp.ne.s32.totalorder %s66, %s67
    %p78 = scmp.eq.s32.totalorder %s16, 0
    %p79 = por %p77, %p78
    %p80 = scmp.ne.s32.totalorder %s66, %s67
    %p81 = scmp.eq.s32.totalorder %s17, 1
    %p82 = por %p80, %p81
    %p84 = scmp.ne.s32.totalorder %s67, %s83
    %p85 = scmp.eq.s32.totalorder %s17, 0
    %p86 = por %p84, %p85
    %s87 = ssub.s32 %s11, %s18
    %p88 = scmp.eq.s32.totalorder %s87, 0
    %s90 = sadd.s32 %s89, 1
    %s91 = scalar_select %p88, %s89, %s90
    %p94 = pneg %p88
    %p95 = scmp.eq.s32.totalorder %s11, 1
    %p96 = por %p94, %p95
    %p97 = scmp.ne.s32.totalorder %s89, %s92
    %p98 = scmp.eq.s32.totalorder %s11, 0
    %p99 = por %p97, %p98
    %p100 = scmp.ne.s32.totalorder %s89, %s92
    %p101 = scmp.eq.s32.totalorder %s16, 1
    %p102 = por %p100, %p101
    %p103 = scmp.ne.s32.totalorder %s92, %s93
    %p104 = scmp.eq.s32.totalorder %s16, 0
    %p105 = por %p103, %p104
    %p106 = scmp.ne.s32.totalorder %s92, %s93
    %p107 = scmp.eq.s32.totalorder %s17, 1
    %p108 = por %p106, %p107
    %p110 = scmp.ne.s32.totalorder %s93, %s109
    %p111 = scmp.eq.s32.totalorder %s17, 0
    %p112 = por %p110, %p111
    %s113 = ssub.s32 %s11, %s18
    %p114 = scmp.eq.s32.totalorder %s113, 0
    %s116 = sadd.s32 %s115, 1
    %s117 = scalar_select %p114, %s115, %s116
    %p120 = pneg %p114
    %p121 = scmp.eq.s32.totalorder %s11, 1
    %p122 = por %p120, %p121
    %p123 = scmp.ne.s32.totalorder %s115, %s118
    %p124 = scmp.eq.s32.totalorder %s11, 0
    %p125 = por %p123, %p124
    %p126 = scmp.ne.s32.totalorder %s115, %s118
    %p127 = scmp.eq.s32.totalorder %s16, 1
    %p128 = por %p126, %p127
    %p129 = scmp.ne.s32.totalorder %s118, %s119
    %p130 = scmp.eq.s32.totalorder %s16, 0
    %p131 = por %p129, %p130
    %p132 = scmp.ne.s32.totalorder %s118, %s119
    %p133 = scmp.eq.s32.totalorder %s17, 1
    %p134 = por %p132, %p133
    %p136 = scmp.ne.s32.totalorder %s119, %s135
    %p137 = scmp.eq.s32.totalorder %s17, 0
    %p138 = por %p136, %p137
    %s139 = ssub.s32 %s11, %s18
    %p140 = scmp.eq.s32.totalorder %s139, 0
    %s142 = sadd.s32 %s141, 1
    %s143 = scalar_select %p140, %s141, %s142
    %p146 = pneg %p140
    %p147 = scmp.eq.s32.totalorder %s11, 1
    %p148 = por %p146, %p147
    %p149 = scmp.ne.s32.totalorder %s141, %s144
    %p150 = scmp.eq.s32.totalorder %s11, 0
    %p151 = por %p149, %p150
    %p152 = scmp.ne.s32.totalorder %s141, %s144
    %p153 = scmp.eq.s32.totalorder %s16, 1
    %p154 = por %p152, %p153
    %p155 = scmp.ne.s32.totalorder %s144, %s145
    %p156 = scmp.eq.s32.totalorder %s16, 0
    %p157 = por %p155, %p156
    %p158 = scmp.ne.s32.totalorder %s144, %s145
    %p159 = scmp.eq.s32.totalorder %s17, 1
    %p160 = por %p158, %p159
    %p162 = scmp.ne.s32.totalorder %s145, %s161
    %p163 = scmp.eq.s32.totalorder %s17, 0
    %p164 = por %p162, %p163
    %p165 = scmp.le.s32.totalorder 1, %s11
    %p166 = scmp.lt.s32.totalorder %s11, 3
    %p167 = pnand %p165, %p166
    %p168 = pneg %p167
    // Predicated region
    $region9: #{tpu_custom_call.1} parent=5 // pred_check
      _
    $region10: #{tpu_custom_call.1} parent=5 // pred_check_branch
      %170 = sbr.rel (%p167) target = $region12
    $region11: #{tpu_custom_call.1} parent=5 // pred_region
      %s171 = ssub.s32 %s11, 1
      // Predicated region
      $region13: #{tpu_custom_call.1} parent=11 // pred_check
        %p172 = pneg %p32
      $region14: #{tpu_custom_call.1} parent=11 // pred_check_branch
        %174 = sbr.rel (%p172) target = $region16
      $region15: #{tpu_custom_call.1} parent=11 // pred_region
        _
      $region16: #{tpu_custom_call.1} parent=11 // pred_fallthru
        _
      // Predicated region
      $region17: #{tpu_custom_call.1} parent=11 // pred_check
        %p175 = pneg %p53
      $region18: #{tpu_custom_call.1} parent=11 // pred_check_branch
        %177 = sbr.rel (%p175) target = $region20
      $region19: #{tpu_custom_call.1} parent=11 // pred_region
        _
      $region20: #{tpu_custom_call.1} parent=11 // pred_fallthru
        _
    $region12: #{tpu_custom_call.1} parent=5 // pred_fallthru
      _
    %p178 = scmp.lt.s32.totalorder %s11, 2
    // Predicated region
    $region21: #{tpu_custom_call.1} parent=5 // pred_check
      %p179 = pneg %p178
    $region22: #{tpu_custom_call.1} parent=5 // pred_check_branch
      %181 = sbr.rel (%p179) target = $region24
    $region23: #{tpu_custom_call.1} parent=5 // pred_region
      // Predicated region
      $region25: #{tpu_custom_call.1} parent=23 // pred_check
        %p182 = pneg %p73
      $region26: #{tpu_custom_call.1} parent=23 // pred_check_branch
        %184 = sbr.rel (%p182) target = $region28
      $region27: #{tpu_custom_call.1} parent=23 // pred_region
        %s185 = smul.u32 42, %s11
        %p186 = scmp.lt.s32.totalorder %s185, 83
        %s187 = scalar_select %p186, %s185, 83
        %s188 = smul.addr %s187, 4
        %s189 = scalar_lea.vmem %s2, %s188
        %s190 = smul.u32 42, %s11
      $region28: #{tpu_custom_call.1} parent=23 // pred_fallthru
        _
      // Predicated region
      $region29: #{tpu_custom_call.1} parent=23 // pred_check
        %p191 = pneg %p99
      $region30: #{tpu_custom_call.1} parent=23 // pred_check_branch
        %193 = sbr.rel (%p191) target = $region32
      $region31: #{tpu_custom_call.1} parent=23 // pred_region
        %s194 = smul.u32 42, %s11
        %p195 = scmp.lt.s32.totalorder %s194, 83
        %s196 = scalar_select %p195, %s194, 83
        %s197 = smul.addr %s196, 8
        %s198 = scalar_lea.vmem %s3, %s197
        %s199 = smul.u32 42, %s11
      $region32: #{tpu_custom_call.1} parent=23 // pred_fallthru
        _
      // Predicated region
      $region33: #{tpu_custom_call.1} parent=23 // pred_check
        %p200 = pneg %p125
      $region34: #{tpu_custom_call.1} parent=23 // pred_check_branch
        %202 = sbr.rel (%p200) target = $region36
      $region35: #{tpu_custom_call.1} parent=23 // pred_region
        %s203 = smul.u32 42, %s11
        %p204 = scmp.lt.s32.totalorder %s203, 83
        %s205 = scalar_select %p204, %s203, 83
        %s206 = smul.addr %s205, 8
        %s207 = scalar_lea.vmem %s4, %s206
        %s208 = smul.u32 42, %s11
      $region36: #{tpu_custom_call.1} parent=23 // pred_fallthru
        _
    $region24: #{tpu_custom_call.1} parent=5 // pred_fallthru
      _
    %p209 = scmp.le.s32.totalorder 1, %s11
    %p210 = scmp.lt.s32.totalorder %s11, 3
    %p211 = pnand %p209, %p210
    %p212 = pneg %p211
    // Predicated region
    $region37: #{tpu_custom_call.1} parent=5 // pred_check
      _
    $region38: #{tpu_custom_call.1} parent=5 // pred_check_branch
      %214 = sbr.rel (%p211) target = $region40
    $region39: #{tpu_custom_call.1} parent=5 // pred_region
      %s215 = ssub.s32 %s11, 1
      %p216 = pneg %p32
      %p217 = pneg %p29
      %p218 = pneg %p53
      %p219 = pneg %p50
      %s220 = smul.u32 42, %s16
      %p221 = scmp.lt.s32.totalorder %s220, 83
      %s222 = scalar_select %p221, %s220, 83
      %s223 = smul.addr %s222, 4
      %s224 = scalar_lea.vmem %s2, %s223
      %p225 = pneg %p79
      %p226 = pneg %p76
      %s227 = smul.u32 42, %s16
      %p228 = scmp.lt.s32.totalorder %s227, 83
      %s229 = scalar_select %p228, %s227, 83
      %s230 = smul.addr %s229, 8
      %s231 = scalar_lea.vmem %s3, %s230
      %p232 = pneg %p105
      %p233 = pneg %p102
      %s234 = smul.u32 42, %s16
      %p235 = scmp.lt.s32.totalorder %s234, 83
      %s236 = scalar_select %p235, %s234, 83
      %s237 = smul.addr %s236, 8
      %s238 = scalar_lea.vmem %s4, %s237
      %p239 = pneg %p131
      %p240 = pneg %p128
      %p241 = pneg %p157
      %p242 = pneg %p154
      %s243 = smul.u32 42, %s16
      %p244 = scmp.lt.s32.totalorder %s243, 83
      %s245 = scalar_select %p244, %s243, 83
      %s246 = smul.addr %s245, 2
      %s247 = smul.addr %s246, 8
      %s248 = scalar_lea.vmem %s5, %s247
      %s249 = smul.u32 42, %s16
      %p250 = scmp.lt.s32.totalorder %s249, 83
      %s251 = scalar_select %p250, %s249, 83
      %s252 = smul.addr %s251, 4
      %s253 = scalar_lea.vmem %s2, %s252
      %s254 = smul.u32 42, %s16
      %s255 = smul.u32 42, %s16
      %p256 = scmp.lt.s32.totalorder %s255, 83
      %s257 = scalar_select %p256, %s255, 83
      %s258 = smul.addr %s257, 8
      %s259 = scalar_lea.vmem %s3, %s258
      %s260 = smul.u32 42, %s16
      %s261 = smul.u32 42, %s16
      %p262 = scmp.lt.s32.totalorder %s261, 83
      %s263 = scalar_select %p262, %s261, 83
      %s264 = smul.addr %s263, 8
      %s265 = scalar_lea.vmem %s4, %s264
      %s266 = smul.u32 42, %s16
      %s267 = smul.u32 42, %s16
      %p268 = scmp.lt.s32.totalorder %s267, 83
      %s269 = scalar_select %p268, %s267, 83
      %s270 = smul.addr %s269, 2
      %s271 = smul.addr %s270, 8
      %s272 = scalar_lea.vmem %s5, %s271
      %s273 = smul.u32 42, %s16
      %v275 = vld [vmem:[%s0] sm:$0xff]
      %v276 = vld [vmem:[%s0 + $0x8] sm:$0xff]
      %v277 = vld [vmem:[%s0 + $0x10] sm:$0xff]
      %v278 = vld [vmem:[%s0 + $0x18] sm:$0xff]
      %v279 = vld [vmem:[%s0 + $0x20] sm:$0xff]
      %v280 = vld [vmem:[%s0 + $0x28] sm:$0xff]
      %v281 = vld [vmem:[%s0 + $0x30] sm:$0xff]
      %v282 = vld [vmem:[%s0 + $0x38] sm:$0xff]
      %v283 = vld [vmem:[%s0 + $0x40] sm:$0xff]
      %v284 = vld [vmem:[%s0 + $0x48] sm:$0xff]
      %v285 = vld [vmem:[%s0 + $0x50] sm:$0xff]
      %v286 = vld [vmem:[%s0 + $0x58] sm:$0xff]
      %v287 = vld [vmem:[%s0 + $0x60] sm:$0xff]
      %v288 = vld [vmem:[%s0 + $0x68] sm:$0xff]
      %v289 = vld [vmem:[%s0 + $0x70] sm:$0xff]
      %v290 = vld [vmem:[%s0 + $0x78] sm:$0xff]
      %v291 = vld [vmem:[%s0 + $0x80] sm:$0xff]
      %v292 = vld [vmem:[%s0 + $0x88] sm:$0xff]
      %v293 = vld [vmem:[%s0 + $0x90] sm:$0xff]
      %v294 = vld [vmem:[%s0 + $0x98] sm:$0xff]
      %v295 = vld [vmem:[%s0 + $0xa0] sm:$0xff]
      %v296 = vld [vmem:[%s0 + $0xa8] sm:$0xff]
      %v297 = vld [vmem:[%s0 + $0xb0] sm:$0xff]
      %v298 = vld [vmem:[%s0 + $0xb8] sm:$0xff]
      %v299 = vld [vmem:[%s0 + $0xc0] sm:$0xff]
      %v300 = vld [vmem:[%s0 + $0xc8] sm:$0xff]
      %v301 = vld [vmem:[%s0 + $0xd0] sm:$0xff]
      %v302 = vld [vmem:[%s0 + $0xd8] sm:$0xff]
      %v303 = vld [vmem:[%s1] sm:$0xff]
      %v304 = vld [vmem:[%s1 + $0x8] sm:$0xff]
      %v305 = vld [vmem:[%s1 + $0x10] sm:$0xff]
      %v306 = vld [vmem:[%s1 + $0x18] sm:$0xff]
      %v307 = vld [vmem:[%s1 + $0x20] sm:$0xff]
      %v308 = vld [vmem:[%s1 + $0x28] sm:$0xff]
      %v309 = vld [vmem:[%s1 + $0x30] sm:$0xff]
      %v310 = vld [vmem:[%s1 + $0x38] sm:$0xff]
      %v311 = vld [vmem:[%s1 + $0x40] sm:$0xff]
      %v312 = vld [vmem:[%s1 + $0x48] sm:$0xff]
      %v313 = vld [vmem:[%s1 + $0x50] sm:$0xff]
      %v314 = vld [vmem:[%s1 + $0x58] sm:$0xff]
      %v315 = vld [vmem:[%s1 + $0x60] sm:$0xff]
      %v316 = vld [vmem:[%s1 + $0x68] sm:$0xff]
      %v317 = vld [vmem:[%s1 + $0x70] sm:$0xff]
      %v318 = vld [vmem:[%s1 + $0x78] sm:$0xff]
      %v319 = vld [vmem:[%s1 + $0x80] sm:$0xff]
      %v320 = vld [vmem:[%s1 + $0x88] sm:$0xff]
      %v321 = vld [vmem:[%s1 + $0x90] sm:$0xff]
      %v322 = vld [vmem:[%s1 + $0x98] sm:$0xff]
      %v323 = vld [vmem:[%s1 + $0xa0] sm:$0xff]
      %v324 = vld [vmem:[%s1 + $0xa8] sm:$0xff]
      %v325 = vld [vmem:[%s1 + $0xb0] sm:$0xff]
      %v326 = vld [vmem:[%s1 + $0xb8] sm:$0xff]
      %v327 = vld [vmem:[%s1 + $0xc0] sm:$0xff]
      %v328 = vld [vmem:[%s1 + $0xc8] sm:$0xff]
      %v329 = vld [vmem:[%s1 + $0xd0] sm:$0xff]
      %v330 = vld [vmem:[%s1 + $0xd8] sm:$0xff]
      %v331 = vadd.f32 %v275, %v303
      %v332 = vadd.f32 %v276, %v304
      %v333 = vadd.f32 %v277, %v305
      %v334 = vadd.f32 %v278, %v306
      %v335 = vadd.f32 %v279, %v307
      %v336 = vadd.f32 %v280, %v308
      %v337 = vadd.f32 %v281, %v309
      %v338 = vadd.f32 %v282, %v310
      %v339 = vadd.f32 %v283, %v311
      %v340 = vadd.f32 %v284, %v312
      %v341 = vadd.f32 %v285, %v313
      %v342 = vadd.f32 %v286, %v314
      %v343 = vadd.f32 %v287, %v315
      %v344 = vadd.f32 %v288, %v316
      %v345 = vadd.f32 %v289, %v317
      %v346 = vadd.f32 %v290, %v318
      %v347 = vadd.f32 %v291, %v319
      %v348 = vadd.f32 %v292, %v320
      %v349 = vadd.f32 %v293, %v321
      %v350 = vadd.f32 %v294, %v322
      %v351 = vadd.f32 %v295, %v323
      %v352 = vadd.f32 %v296, %v324
      %v353 = vadd.f32 %v297, %v325
      %v354 = vadd.f32 %v298, %v326
      %v355 = vadd.f32 %v299, %v327
      %v356 = vadd.f32 %v300, %v328
      %v357 = vadd.f32 %v301, %v329
      %v358 = vadd.f32 %v302, %v330
      %v359 = vpack.c.bf16 %v333, %v331
      %v360 = vpack.c.bf16 %v334, %v332
      %v361 = vpack.c.bf16 %v337, %v335
      %v362 = vpack.c.bf16 %v338, %v336
      %v363 = vpack.c.bf16 %v341, %v339
      %v364 = vpack.c.bf16 %v342, %v340
      %v365 = vpack.c.bf16 %v345, %v343
      %v366 = vpack.c.bf16 %v346, %v344
      %v367 = vpack.c.bf16 %v349, %v347
      %v368 = vpack.c.bf16 %v350, %v348
      %v369 = vpack.c.bf16 %v353, %v351
      %v370 = vpack.c.bf16 %v354, %v352
      %v371 = vpack.c.bf16 %v357, %v355
      %v372 = vpack.c.bf16 %v358, %v356
      %v373 = vld [vmem:[%s253] sm:$0xf]
      %v374 = vld [vmem:[%s253 + $0x4] sm:$0xf]
      %v375 = vld [vmem:[%s253 + $0x8] sm:$0xf]
      %v376 = vld [vmem:[%s253 + $0xc] sm:$0xf]
      %v377 = vld [vmem:[%s253 + $0x10] sm:$0xf]
      %v378 = vld [vmem:[%s253 + $0x14] sm:$0xf]
      %v379 = vld [vmem:[%s253 + $0x18] sm:$0xf]
      %v380 = vld [vmem:[%s253 + $0x1c] sm:$0xf]
      %v381 = vld [vmem:[%s253 + $0x20] sm:$0xf]
      %v382 = vld [vmem:[%s253 + $0x24] sm:$0xf]
      %v383 = vld [vmem:[%s253 + $0x28] sm:$0xf]
      %v384 = vld [vmem:[%s253 + $0x2c] sm:$0xf]
      %v385 = vld [vmem:[%s253 + $0x30] sm:$0xf]
      %v386 = vld [vmem:[%s253 + $0x34] sm:$0xf]
      %v387 = vld [vmem:[%s253 + $0x38] sm:$0xf]
      %v388 = vld [vmem:[%s253 + $0x3c] sm:$0xf]
      %v389 = vld [vmem:[%s253 + $0x40] sm:$0xf]
      %v390 = vld [vmem:[%s253 + $0x44] sm:$0xf]
      %v391 = vld [vmem:[%s253 + $0x48] sm:$0xf]
      %v392 = vld [vmem:[%s253 + $0x4c] sm:$0xf]
      %v393 = vld [vmem:[%s253 + $0x50] sm:$0xf]
      %v394 = vld [vmem:[%s253 + $0x54] sm:$0xf]
      %v395 = vld [vmem:[%s253 + $0x58] sm:$0xf]
      %v396 = vld [vmem:[%s253 + $0x5c] sm:$0xf]
      %v397 = vld [vmem:[%s253 + $0x60] sm:$0xf]
      %v398 = vld [vmem:[%s253 + $0x64] sm:$0xf]
      %v399 = vld [vmem:[%s253 + $0x68] sm:$0xf]
      %v400 = vld [vmem:[%s253 + $0x6c] sm:$0xf]
      %v401 = vld [vmem:[%s253 + $0x70] sm:$0xf]
      %v402 = vld [vmem:[%s253 + $0x74] sm:$0xf]
      %v403 = vld [vmem:[%s253 + $0x78] sm:$0xf]
      %v404 = vld [vmem:[%s253 + $0x7c] sm:$0xf]
      %v405 = vld [vmem:[%s253 + $0x80] sm:$0xf]
      %v406 = vld [vmem:[%s253 + $0x84] sm:$0xf]
      %v407 = vld [vmem:[%s253 + $0x88] sm:$0xf]
      %v408 = vld [vmem:[%s253 + $0x8c] sm:$0xf]
      %v409 = vld [vmem:[%s253 + $0x90] sm:$0xf]
      %v410 = vld [vmem:[%s253 + $0x94] sm:$0xf]
      %v411 = vld [vmem:[%s253 + $0x98] sm:$0xf]
      %v412 = vld [vmem:[%s253 + $0x9c] sm:$0xf]
      %v413 = vld [vmem:[%s253 + $0xa0] sm:$0xf]
      %v414 = vld [vmem:[%s253 + $0xa4] sm:$0xf]
      %v457 = vunpack.c.l.b16 %v373
      %v458 = vunpack.c.l.b16 %v374
      %v459 = vunpack.c.l.b16 %v375
      %v460 = vunpack.c.l.b16 %v376
      %v461 = vunpack.c.l.b16 %v377
      %v462 = vunpack.c.l.b16 %v378
      %v463 = vunpack.c.l.b16 %v379
      %v464 = vunpack.c.l.b16 %v380
      %v465 = vunpack.c.l.b16 %v381
      %v466 = vunpack.c.l.b16 %v382
      %v467 = vunpack.c.l.b16 %v383
      %v468 = vunpack.c.l.b16 %v384
      %v469 = vunpack.c.l.b16 %v385
      %v470 = vunpack.c.l.b16 %v386
      %v471 = vunpack.c.l.b16 %v387
      %v472 = vunpack.c.l.b16 %v388
      %v473 = vunpack.c.l.b16 %v389
      %v474 = vunpack.c.l.b16 %v390
      %v475 = vunpack.c.l.b16 %v391
      %v476 = vunpack.c.l.b16 %v392
      %v477 = vunpack.c.l.b16 %v393
      %v478 = vunpack.c.l.b16 %v394
      %v479 = vunpack.c.l.b16 %v395
      %v480 = vunpack.c.l.b16 %v396
      %v481 = vunpack.c.l.b16 %v397
      %v482 = vunpack.c.l.b16 %v398
      %v483 = vunpack.c.l.b16 %v399
      %v484 = vunpack.c.l.b16 %v400
      %v485 = vunpack.c.l.b16 %v401
      %v486 = vunpack.c.l.b16 %v402
      %v487 = vunpack.c.l.b16 %v403
      %v488 = vunpack.c.l.b16 %v404
      %v489 = vunpack.c.l.b16 %v405
      %v490 = vunpack.c.l.b16 %v406
      %v491 = vunpack.c.l.b16 %v407
      %v492 = vunpack.c.l.b16 %v408
      %v493 = vunpack.c.l.b16 %v409
      %v494 = vunpack.c.l.b16 %v410
      %v495 = vunpack.c.l.b16 %v411
      %v496 = vunpack.c.l.b16 %v412
      %v497 = vunpack.c.l.b16 %v413
      %v498 = vunpack.c.l.b16 %v414
      %v499 = vpack.c.b16 %v458, %v457
      %v500 = vpack.c.b16 %v460, %v459
      %v501 = vpack.c.b16 %v462, %v461
      %v502 = vpack.c.b16 %v464, %v463
      %v503 = vpack.c.b16 %v466, %v465
      %v504 = vpack.c.b16 %v468, %v467
      %v505 = vpack.c.b16 %v470, %v469
      %v506 = vpack.c.b16 %v472, %v471
      %v507 = vpack.c.b16 %v474, %v473
      %v508 = vpack.c.b16 %v476, %v475
      %v509 = vpack.c.b16 %v478, %v477
      %v510 = vpack.c.b16 %v480, %v479
      %v511 = vpack.c.b16 %v482, %v481
      %v512 = vpack.c.b16 %v484, %v483
      %v513 = vpack.c.b16 %v486, %v485
      %v514 = vpack.c.b16 %v488, %v487
      %v515 = vpack.c.b16 %v490, %v489
      %v516 = vpack.c.b16 %v492, %v491
      %v517 = vpack.c.b16 %v494, %v493
      %v518 = vpack.c.b16 %v496, %v495
      %v519 = vpack.c.b16 %v498, %v497
      %vm520 = vcmask 916480
      %v522 = vsel %vm520, %v499, 0
      %v525 = vsel %vm520, %v500, 0
      %v528 = vsel %vm520, %v501, 0
      %v531 = vsel %vm520, %v502, 0
      %v534 = vsel %vm520, %v503, 0
      %v537 = vsel %vm520, %v504, 0
      %v540 = vsel %vm520, %v505, 0
      %v543 = vsel %vm520, %v506, 0
      %v546 = vsel %vm520, %v507, 0
      %v549 = vsel %vm520, %v508, 0
      %v552 = vsel %vm520, %v509, 0
      %v555 = vsel %vm520, %v510, 0
      %v558 = vsel %vm520, %v511, 0
      %v561 = vsel %vm520, %v512, 0
      %v564 = vsel %vm520, %v513, 0
      %v567 = vsel %vm520, %v514, 0
      %v570 = vsel %vm520, %v515, 0
      %v573 = vsel %vm520, %v516, 0
      %v576 = vsel %vm520, %v517, 0
      %v579 = vsel %vm520, %v518, 0
      %v582 = vsel %vm520, %v519, 0
      %584 = vmatprep.subr.bf16.mxu0 %v360
      %585 = vmatpush1.bf16.msra.mxu0 %v359
      %586 = vmatprep.subr.bf16.mxu0 %v362
      %587 = vmatpush1.bf16.msra.mxu0 %v361
      %588 = vmatprep.subr.bf16.mxu0 %v364
      %589 = vmatpush1.bf16.msra.mxu0 %v363
      %590 = vmatprep.subr.bf16.mxu0 %v366
      %591 = vmatpush1.bf16.msra.mxu0 %v365
      %592 = vmatprep.subr.bf16.mxu0 %v368
      %593 = vmatpush1.bf16.msra.mxu0 %v367
      %594 = vmatprep.subr.bf16.mxu0 %v370
      %595 = vmatpush1.bf16.msra.mxu0 %v369
      %596 = vmatprep.subr.bf16.mxu0 %v372
      %597 = vmatpush1.bf16.msra.mxu0 %v371
      %598 = vmatprep.subr.bf16.mxu0 0
      %599 = vmatpush1.bf16.msra.mxu0 0
      %600 = vmatprep.subr.bf16.mxu0 0
      %601 = vmatpush1.bf16.msra.mxu0 0
      %602 = vmatprep.subr.bf16.mxu0 0
      %603 = vmatpush1.bf16.msra.mxu0 0
      %604 = vmatprep.subr.bf16.mxu0 0
      %605 = vmatpush1.bf16.msra.mxu0 0
      %606 = vmatprep.subr.bf16.mxu0 0
      %607 = vmatpush1.bf16.msra.mxu0 0
      %608 = vmatprep.subr.bf16.mxu0 0
      %609 = vmatpush1.bf16.msra.mxu0 0
      %610 = vmatprep.subr.bf16.mxu0 0
      %611 = vmatpush1.bf16.msra.mxu0 0
      %612 = vmatprep.subr.bf16.mxu0 0
      %613 = vmatpush1.bf16.msra.mxu0 0
      %614 = vmatprep.subr.bf16.mxu0 0
      %615 = vmatpush1.bf16.msra.mxu0 0
      %616 = vmatprep.mubr.bf16.mxu0 0
      %617 = vmatmul.mubr.bf16.gmra.mrb[0].mxu0 %v522
      %v618 = vpop.f32.mrb[0].mxu0
      %v619 = vadd.f32 0.0, %v618
      %v620 = vpop.f32.mrb[0].mxu0
      %v621 = vadd.f32 0.0, %v620
      %v622 = vpop.f32.mrb[0].mxu0
      %v623 = vadd.f32 0.0, %v622
      %v624 = vpop.f32.mrb[0].mxu0
      %v625 = vadd.f32 0.0, %v624
      %626 = vmatprep.mubr.bf16.mxu0 0
      %627 = vmatmul.mubr.bf16.gmra.mrb[0].mxu0 %v525
      %v628 = vpop.f32.mrb[0].mxu0
      %v629 = vadd.f32 0.0, %v628
      %v630 = vpop.f32.mrb[0].mxu0
      %v631 = vadd.f32 0.0, %v630
      %v632 = vpop.f32.mrb[0].mxu0
      %v633 = vadd.f32 0.0, %v632
      %v634 = vpop.f32.mrb[0].mxu0
      %v635 = vadd.f32 0.0, %v634
      %636 = vmatprep.mubr.bf16.mxu0 0
      %637 = vmatmul.mubr.bf16.gmra.mrb[0].mxu0 %v528
      %v638 = vpop.f32.mrb[0].mxu0
      %v639 = vadd.f32 0.0, %v638
      %v640 = vpop.f32.mrb[0].mxu0
      %v641 = vadd.f32 0.0, %v640
      %v642 = vpop.f32.mrb[0].mxu0
      %v643 = vadd.f32 0.0, %v642
      %v644 = vpop.f32.mrb[0].mxu0
      %v645 = vadd.f32 0.0, %v644
      %646 = vmatprep.mubr.bf16.mxu0 0
      %647 = vmatmul.mubr.bf16.gmra.mrb[0].mxu0 %v531
      %v648 = vpop.f32.mrb[0].mxu0
      %v649 = vadd.f32 0.0, %v648
      %v650 = vpop.f32.mrb[0].mxu0
      %v651 = vadd.f32 0.0, %v650
      %v652 = vpop.f32.mrb[0].mxu0
      %v653 = vadd.f32 0.0, %v652
      %v654 = vpop.f32.mrb[0].mxu0
      %v655 = vadd.f32 0.0, %v654
      %656 = vmatprep.mubr.bf16.mxu0 0
      %657 = vmatmul.mubr.bf16.gmra.mrb[0].mxu0 %v534
      %v658 = vpop.f32.mrb[0].mxu0
      %v659 = vadd.f32 0.0, %v658
      %v660 = vpop.f32.mrb[0].mxu0
      %v661 = vadd.f32 0.0, %v660
      %v662 = vpop.f32.mrb[0].mxu0
      %v663 = vadd.f32 0.0, %v662
      %v664 = vpop.f32.mrb[0].mxu0
      %v665 = vadd.f32 0.0, %v664
      %666 = vmatprep.mubr.bf16.mxu0 0
      %667 = vmatmul.mubr.bf16.gmra.mrb[0].mxu0 %v537
      %v668 = vpop.f32.mrb[0].mxu0
      %v669 = vadd.f32 0.0, %v668
      %v670 = vpop.f32.mrb[0].mxu0
      %v671 = vadd.f32 0.0, %v670
      %v672 = vpop.f32.mrb[0].mxu0
      %v673 = vadd.f32 0.0, %v672
      %v674 = vpop.f32.mrb[0].mxu0
      %v675 = vadd.f32 0.0, %v674
      %676 = vmatprep.mubr.bf16.mxu0 0
      %677 = vmatmul.mubr.bf16.gmra.mrb[0].mxu0 %v540
      %v678 = vpop.f32.mrb[0].mxu0
      %v679 = vadd.f32 0.0, %v678
      %v680 = vpop.f32.mrb[0].mxu0
      %v681 = vadd.f32 0.0, %v680
      %v682 = vpop.f32.mrb[0].mxu0
      %v683 = vadd.f32 0.0, %v682
      %v684 = vpop.f32.mrb[0].mxu0
      %v685 = vadd.f32 0.0, %v684
      %686 = vmatprep.mubr.bf16.mxu0 0
      %687 = vmatmul.mubr.bf16.gmra.mrb[0].mxu0 %v543
      %v688 = vpop.f32.mrb[0].mxu0
      %v689 = vadd.f32 0.0, %v688
      %v690 = vpop.f32.mrb[0].mxu0
      %v691 = vadd.f32 0.0, %v690
      %v692 = vpop.f32.mrb[0].mxu0
      %v693 = vadd.f32 0.0, %v692
      %v694 = vpop.f32.mrb[0].mxu0
      %v695 = vadd.f32 0.0, %v694
      %696 = vmatprep.mubr.bf16.mxu0 0
      %697 = vmatmul.mubr.bf16.gmra.mrb[0].mxu0 %v546
      %v698 = vpop.f32.mrb[0].mxu0
      %v699 = vadd.f32 0.0, %v698
      %v700 = vpop.f32.mrb[0].mxu0
      %v701 = vadd.f32 0.0, %v700
      %v702 = vpop.f32.mrb[0].mxu0
      %v703 = vadd.f32 0.0, %v702
      %v704 = vpop.f32.mrb[0].mxu0
      %v705 = vadd.f32 0.0, %v704
      %706 = vmatprep.mubr.bf16.mxu0 0
      %707 = vmatmul.mubr.bf16.gmra.mrb[0].mxu0 %v549
      %v708 = vpop.f32.mrb[0].mxu0
      %v709 = vadd.f32 0.0, %v708
      %v710 = vpop.f32.mrb[0].mxu0
      %v711 = vadd.f32 0.0, %v710
      %v712 = vpop.f32.mrb[0].mxu0
      %v713 = vadd.f32 0.0, %v712
      %v714 = vpop.f32.mrb[0].mxu0
      %v715 = vadd.f32 0.0, %v714
      %716 = vmatprep.mubr.bf16.mxu0 0
      %717 = vmatmul.mubr.bf16.gmra.mrb[0].mxu0 %v552
      %v718 = vpop.f32.mrb[0].mxu0
      %v719 = vadd.f32 0.0, %v718
      %v720 = vpop.f32.mrb[0].mxu0
      %v721 = vadd.f32 0.0, %v720
      %v722 = vpop.f32.mrb[0].mxu0
      %v723 = vadd.f32 0.0, %v722
      %v724 = vpop.f32.mrb[0].mxu0
      %v725 = vadd.f32 0.0, %v724
      %726 = vmatprep.mubr.bf16.mxu0 0
      %727 = vmatmul.mubr.bf16.gmra.mrb[0].mxu0 %v555
      %v728 = vpop.f32.mrb[0].mxu0
      %v729 = vadd.f32 0.0, %v728
      %v730 = vpop.f32.mrb[0].mxu0
      %v731 = vadd.f32 0.0, %v730
      %v732 = vpop.f32.mrb[0].mxu0
      %v733 = vadd.f32 0.0, %v732
      %v734 = vpop.f32.mrb[0].mxu0
      %v735 = vadd.f32 0.0, %v734
      %736 = vmatprep.mubr.bf16.mxu0 0
      %737 = vmatmul.mubr.bf16.gmra.mrb[0].mxu0 %v558
      %v738 = vpop.f32.mrb[0].mxu0
      %v739 = vadd.f32 0.0, %v738
      %v740 = vpop.f32.mrb[0].mxu0
      %v741 = vadd.f32 0.0, %v740
      %v742 = vpop.f32.mrb[0].mxu0
      %v743 = vadd.f32 0.0, %v742
      %v744 = vpop.f32.mrb[0].mxu0
      %v745 = vadd.f32 0.0, %v744
      %746 = vmatprep.mubr.bf16.mxu0 0
      %747 = vmatmul.mubr.bf16.gmra.mrb[0].mxu0 %v561
      %v748 = vpop.f32.mrb[0].mxu0
      %v749 = vadd.f32 0.0, %v748
      %v750 = vpop.f32.mrb[0].mxu0
      %v751 = vadd.f32 0.0, %v750
      %v752 = vpop.f32.mrb[0].mxu0
      %v753 = vadd.f32 0.0, %v752
      %v754 = vpop.f32.mrb[0].mxu0
      %v755 = vadd.f32 0.0, %v754
      %756 = vmatprep.mubr.bf16.mxu0 0
      %757 = vmatmul.mubr.bf16.gmra.mrb[0].mxu0 %v564
      %v758 = vpop.f32.mrb[0].mxu0
      %v759 = vadd.f32 0.0, %v758
      %v760 = vpop.f32.mrb[0].mxu0
      %v761 = vadd.f32 0.0, %v760
      %v762 = vpop.f32.mrb[0].mxu0
      %v763 = vadd.f32 0.0, %v762
      %v764 = vpop.f32.mrb[0].mxu0
      %v765 = vadd.f32 0.0, %v764
      %766 = vmatprep.mubr.bf16.mxu0 0
      %767 = vmatmul.mubr.bf16.gmra.mrb[0].mxu0 %v567
      %v768 = vpop.f32.mrb[0].mxu0
      %v769 = vadd.f32 0.0, %v768
      %v770 = vpop.f32.mrb[0].mxu0
      %v771 = vadd.f32 0.0, %v770
      %v772 = vpop.f32.mrb[0].mxu0
      %v773 = vadd.f32 0.0, %v772
      %v774 = vpop.f32.mrb[0].mxu0
      %v775 = vadd.f32 0.0, %v774
      %776 = vmatprep.mubr.bf16.mxu0 0
      %777 = vmatmul.mubr.bf16.gmra.mrb[0].mxu0 %v570
      %v778 = vpop.f32.mrb[0].mxu0
      %v779 = vadd.f32 0.0, %v778
      %v780 = vpop.f32.mrb[0].mxu0
      %v781 = vadd.f32 0.0, %v780
      %v782 = vpop.f32.mrb[0].mxu0
      %v783 = vadd.f32 0.0, %v782
      %v784 = vpop.f32.mrb[0].mxu0
      %v785 = vadd.f32 0.0, %v784
      %786 = vmatprep.mubr.bf16.mxu0 0
      %787 = vmatmul.mubr.bf16.gmra.mrb[0].mxu0 %v573
      %v788 = vpop.f32.mrb[0].mxu0
      %v789 = vadd.f32 0.0, %v788
      %v790 = vpop.f32.mrb[0].mxu0
      %v791 = vadd.f32 0.0, %v790
      %v792 = vpop.f32.mrb[0].mxu0
      %v793 = vadd.f32 0.0, %v792
      %v794 = vpop.f32.mrb[0].mxu0
      %v795 = vadd.f32 0.0, %v794
      %796 = vmatprep.mubr.bf16.mxu0 0
      %797 = vmatmul.mubr.bf16.gmra.mrb[0].mxu0 %v576
      %v798 = vpop.f32.mrb[0].mxu0
      %v799 = vadd.f32 0.0, %v798
      %v800 = vpop.f32.mrb[0].mxu0
      %v801 = vadd.f32 0.0, %v800
      %v802 = vpop.f32.mrb[0].mxu0
      %v803 = vadd.f32 0.0, %v802
      %v804 = vpop.f32.mrb[0].mxu0
      %v805 = vadd.f32 0.0, %v804
      %806 = vmatprep.mubr.bf16.mxu0 0
      %807 = vmatmul.mubr.bf16.gmra.mrb[0].mxu0 %v579
      %v808 = vpop.f32.mrb[0].mxu0
      %v809 = vadd.f32 0.0, %v808
      %v810 = vpop.f32.mrb[0].mxu0
      %v811 = vadd.f32 0.0, %v810
      %v812 = vpop.f32.mrb[0].mxu0
      %v813 = vadd.f32 0.0, %v812
      %v814 = vpop.f32.mrb[0].mxu0
      %v815 = vadd.f32 0.0, %v814
      %816 = vmatprep.mubr.bf16.mxu0 0
      %817 = vmatmul.mubr.bf16.gmra.mrb[0].mxu0 %v582
      %v818 = vpop.f32.mrb[0].mxu0
      %v819 = vadd.f32 0.0, %v818
      %v820 = vpop.f32.mrb[0].mxu0
      %v821 = vadd.f32 0.0, %v820
      %v822 = vpop.f32.mrb[0].mxu0
      %v823 = vadd.f32 0.0, %v822
      %v824 = vpop.f32.mrb[0].mxu0
      %v825 = vadd.f32 0.0, %v824
      %826 = vdwg.mxu0
      %vm827 = vcmask 556032
      %v828 = vsel %vm827, %v621, 0.0
      %v829 = vadd.f32 %v619, %v828
      %830 = vadd.xlane.f32.xlu0 %v829
      %v831 = vpop.xlane.xlu0 %830
      %v832 = vsel %vm827, %v625, 0.0
      %v833 = vadd.f32 %v623, %v832
      %834 = vadd.xlane.f32.xlu0 %v833
      %v835 = vpop.xlane.xlu0 %834
      %v836 = vsel %vm827, %v631, 0.0
      %v837 = vadd.f32 %v629, %v836
      %838 = vadd.xlane.f32.xlu0 %v837
      %v839 = vpop.xlane.xlu0 %838
      %v840 = vsel %vm827, %v635, 0.0
      %v841 = vadd.f32 %v633, %v840
      %842 = vadd.xlane.f32.xlu0 %v841
      %v843 = vpop.xlane.xlu0 %842
      %v844 = vsel %vm827, %v641, 0.0
      %v845 = vadd.f32 %v639, %v844
      %846 = vadd.xlane.f32.xlu0 %v845
      %v847 = vpop.xlane.xlu0 %846
      %v848 = vsel %vm827, %v645, 0.0
      %v849 = vadd.f32 %v643, %v848
      %850 = vadd.xlane.f32.xlu0 %v849
      %v851 = vpop.xlane.xlu0 %850
      %v852 = vsel %vm827, %v651, 0.0
      %v853 = vadd.f32 %v649, %v852
      %854 = vadd.xlane.f32.xlu0 %v853
      %v855 = vpop.xlane.xlu0 %854
      %v856 = vsel %vm827, %v655, 0.0
      %v857 = vadd.f32 %v653, %v856
      %858 = vadd.xlane.f32.xlu0 %v857
      %v859 = vpop.xlane.xlu0 %858
      %v860 = vsel %vm827, %v661, 0.0
      %v861 = vadd.f32 %v659, %v860
      %862 = vadd.xlane.f32.xlu0 %v861
      %v863 = vpop.xlane.xlu0 %862
      %v864 = vsel %vm827, %v665, 0.0
      %v865 = vadd.f32 %v663, %v864
      %866 = vadd.xlane.f32.xlu0 %v865
      %v867 = vpop.xlane.xlu0 %866
      %v868 = vsel %vm827, %v671, 0.0
      %v869 = vadd.f32 %v669, %v868
      %870 = vadd.xlane.f32.xlu0 %v869
      %v871 = vpop.xlane.xlu0 %870
      %v872 = vsel %vm827, %v675, 0.0
      %v873 = vadd.f32 %v673, %v872
      %874 = vadd.xlane.f32.xlu0 %v873
      %v875 = vpop.xlane.xlu0 %874
      %v876 = vsel %vm827, %v681, 0.0
      %v877 = vadd.f32 %v679, %v876
      %878 = vadd.xlane.f32.xlu0 %v877
      %v879 = vpop.xlane.xlu0 %878
      %v880 = vsel %vm827, %v685, 0.0
      %v881 = vadd.f32 %v683, %v880
      %882 = vadd.xlane.f32.xlu0 %v881
      %v883 = vpop.xlane.xlu0 %882
      %v884 = vsel %vm827, %v691, 0.0
      %v885 = vadd.f32 %v689, %v884
      %886 = vadd.xlane.f32.xlu0 %v885
      %v887 = vpop.xlane.xlu0 %886
      %v888 = vsel %vm827, %v695, 0.0
      %v889 = vadd.f32 %v693, %v888
      %890 = vadd.xlane.f32.xlu0 %v889
      %v891 = vpop.xlane.xlu0 %890
      %v892 = vsel %vm827, %v701, 0.0
      %v893 = vadd.f32 %v699, %v892
      %894 = vadd.xlane.f32.xlu0 %v893
      %v895 = vpop.xlane.xlu0 %894
      %v896 = vsel %vm827, %v705, 0.0
      %v897 = vadd.f32 %v703, %v896
      %898 = vadd.xlane.f32.xlu0 %v897
      %v899 = vpop.xlane.xlu0 %898
      %v900 = vsel %vm827, %v711, 0.0
      %v901 = vadd.f32 %v709, %v900
      %902 = vadd.xlane.f32.xlu0 %v901
      %v903 = vpop.xlane.xlu0 %902
      %v904 = vsel %vm827, %v715, 0.0
      %v905 = vadd.f32 %v713, %v904
      %906 = vadd.xlane.f32.xlu0 %v905
      %v907 = vpop.xlane.xlu0 %906
      %v908 = vsel %vm827, %v721, 0.0
      %v909 = vadd.f32 %v719, %v908
      %910 = vadd.xlane.f32.xlu0 %v909
      %v911 = vpop.xlane.xlu0 %910
      %v912 = vsel %vm827, %v725, 0.0
      %v913 = vadd.f32 %v723, %v912
      %914 = vadd.xlane.f32.xlu0 %v913
      %v915 = vpop.xlane.xlu0 %914
      %v916 = vsel %vm827, %v731, 0.0
      %v917 = vadd.f32 %v729, %v916
      %918 = vadd.xlane.f32.xlu0 %v917
      %v919 = vpop.xlane.xlu0 %918
      %v920 = vsel %vm827, %v735, 0.0
      %v921 = vadd.f32 %v733, %v920
      %922 = vadd.xlane.f32.xlu0 %v921
      %v923 = vpop.xlane.xlu0 %922
      %v924 = vsel %vm827, %v741, 0.0
      %v925 = vadd.f32 %v739, %v924
      %926 = vadd.xlane.f32.xlu0 %v925
      %v927 = vpop.xlane.xlu0 %926
      %v928 = vsel %vm827, %v745, 0.0
      %v929 = vadd.f32 %v743, %v928
      %930 = vadd.xlane.f32.xlu0 %v929
      %v931 = vpop.xlane.xlu0 %930
      %v932 = vsel %vm827, %v751, 0.0
      %v933 = vadd.f32 %v749, %v932
      %934 = vadd.xlane.f32.xlu0 %v933
      %v935 = vpop.xlane.xlu0 %934
      %v936 = vsel %vm827, %v755, 0.0
      %v937 = vadd.f32 %v753, %v936
      %938 = vadd.xlane.f32.xlu0 %v937
      %v939 = vpop.xlane.xlu0 %938
      %v940 = vsel %vm827, %v761, 0.0
      %v941 = vadd.f32 %v759, %v940
      %942 = vadd.xlane.f32.xlu0 %v941
      %v943 = vpop.xlane.xlu0 %942
      %v944 = vsel %vm827, %v765, 0.0
      %v945 = vadd.f32 %v763, %v944
      %946 = vadd.xlane.f32.xlu0 %v945
      %v947 = vpop.xlane.xlu0 %946
      %v948 = vsel %vm827, %v771, 0.0
      %v949 = vadd.f32 %v769, %v948
      %950 = vadd.xlane.f32.xlu0 %v949
      %v951 = vpop.xlane.xlu0 %950
      %v952 = vsel %vm827, %v775, 0.0
      %v953 = vadd.f32 %v773, %v952
      %954 = vadd.xlane.f32.xlu0 %v953
      %v955 = vpop.xlane.xlu0 %954
      %v956 = vsel %vm827, %v781, 0.0
      %v957 = vadd.f32 %v779, %v956
      %958 = vadd.xlane.f32.xlu0 %v957
      %v959 = vpop.xlane.xlu0 %958
      %v960 = vsel %vm827, %v785, 0.0
      %v961 = vadd.f32 %v783, %v960
      %962 = vadd.xlane.f32.xlu0 %v961
      %v963 = vpop.xlane.xlu0 %962
      %v964 = vsel %vm827, %v791, 0.0
      %v965 = vadd.f32 %v789, %v964
      %966 = vadd.xlane.f32.xlu0 %v965
      %v967 = vpop.xlane.xlu0 %966
      %v968 = vsel %vm827, %v795, 0.0
      %v969 = vadd.f32 %v793, %v968
      %970 = vadd.xlane.f32.xlu0 %v969
      %v971 = vpop.xlane.xlu0 %970
      %v972 = vsel %vm827, %v801, 0.0
      %v973 = vadd.f32 %v799, %v972
      %974 = vadd.xlane.f32.xlu0 %v973
      %v975 = vpop.xlane.xlu0 %974
      %v976 = vsel %vm827, %v805, 0.0
      %v977 = vadd.f32 %v803, %v976
      %978 = vadd.xlane.f32.xlu0 %v977
      %v979 = vpop.xlane.xlu0 %978
      %v980 = vsel %vm827, %v811, 0.0
      %v981 = vadd.f32 %v809, %v980
      %982 = vadd.xlane.f32.xlu0 %v981
      %v983 = vpop.xlane.xlu0 %982
      %v984 = vsel %vm827, %v815, 0.0
      %v985 = vadd.f32 %v813, %v984
      %986 = vadd.xlane.f32.xlu0 %v985
      %v987 = vpop.xlane.xlu0 %986
      %v988 = vsel %vm827, %v821, 0.0
      %v989 = vadd.f32 %v819, %v988
      %990 = vadd.xlane.f32.xlu0 %v989
      %v991 = vpop.xlane.xlu0 %990
      %v992 = vsel %vm827, %v825, 0.0
      %v993 = vadd.f32 %v823, %v992
      %994 = vadd.xlane.f32.xlu0 %v993
      %v995 = vpop.xlane.xlu0 %994
      %v996 = vmul.f32 %v619, %v619
      %v997 = vmul.f32 %v621, %v621
      %v998 = vmul.f32 %v623, %v623
      %v999 = vmul.f32 %v625, %v625
      %v1000 = vmul.f32 %v629, %v629
      %v1001 = vmul.f32 %v631, %v631
      %v1002 = vmul.f32 %v633, %v633
      %v1003 = vmul.f32 %v635, %v635
      %v1004 = vmul.f32 %v639, %v639
      %v1005 = vmul.f32 %v641, %v641
      %v1006 = vmul.f32 %v643, %v643
      %v1007 = vmul.f32 %v645, %v645
      %v1008 = vmul.f32 %v649, %v649
      %v1009 = vmul.f32 %v651, %v651
      %v1010 = vmul.f32 %v653, %v653
      %v1011 = vmul.f32 %v655, %v655
      %v1012 = vmul.f32 %v659, %v659
      %v1013 = vmul.f32 %v661, %v661
      %v1014 = vmul.f32 %v663, %v663
      %v1015 = vmul.f32 %v665, %v665
      %v1016 = vmul.f32 %v669, %v669
      %v1017 = vmul.f32 %v671, %v671
      %v1018 = vmul.f32 %v673, %v673
      %v1019 = vmul.f32 %v675, %v675
      %v1020 = vmul.f32 %v679, %v679
      %v1021 = vmul.f32 %v681, %v681
      %v1022 = vmul.f32 %v683, %v683
      %v1023 = vmul.f32 %v685, %v685
      %v1024 = vmul.f32 %v689, %v689
      %v1025 = vmul.f32 %v691, %v691
      %v1026 = vmul.f32 %v693, %v693
      %v1027 = vmul.f32 %v695, %v695
      %v1028 = vmul.f32 %v699, %v699
      %v1029 = vmul.f32 %v701, %v701
      %v1030 = vmul.f32 %v703, %v703
      %v1031 = vmul.f32 %v705, %v705
      %v1032 = vmul.f32 %v709, %v709
      %v1033 = vmul.f32 %v711, %v711
      %v1034 = vmul.f32 %v713, %v713
      %v1035 = vmul.f32 %v715, %v715
      %v1036 = vmul.f32 %v719, %v719
      %v1037 = vmul.f32 %v721, %v721
      %v1038 = vmul.f32 %v723, %v723
      %v1039 = vmul.f32 %v725, %v725
      %v1040 = vmul.f32 %v729, %v729
      %v1041 = vmul.f32 %v731, %v731
      %v1042 = vmul.f32 %v733, %v733
      %v1043 = vmul.f32 %v735, %v735
      %v1044 = vmul.f32 %v739, %v739
      %v1045 = vmul.f32 %v741, %v741
      %v1046 = vmul.f32 %v743, %v743
      %v1047 = vmul.f32 %v745, %v745
      %v1048 = vmul.f32 %v749, %v749
      %v1049 = vmul.f32 %v751, %v751
      %v1050 = vmul.f32 %v753, %v753
      %v1051 = vmul.f32 %v755, %v755
      %v1052 = vmul.f32 %v759, %v759
      %v1053 = vmul.f32 %v761, %v761
      %v1054 = vmul.f32 %v763, %v763
      %v1055 = vmul.f32 %v765, %v765
      %v1056 = vmul.f32 %v769, %v769
      %v1057 = vmul.f32 %v771, %v771
      %v1058 = vmul.f32 %v773, %v773
      %v1059 = vmul.f32 %v775, %v775
      %v1060 = vmul.f32 %v779, %v779
      %v1061 = vmul.f32 %v781, %v781
      %v1062 = vmul.f32 %v783, %v783
      %v1063 = vmul.f32 %v785, %v785
      %v1064 = vmul.f32 %v789, %v789
      %v1065 = vmul.f32 %v791, %v791
      %v1066 = vmul.f32 %v793, %v793
      %v1067 = vmul.f32 %v795, %v795
      %v1068 = vmul.f32 %v799, %v799
      %v1069 = vmul.f32 %v801, %v801
      %v1070 = vmul.f32 %v803, %v803
      %v1071 = vmul.f32 %v805, %v805
      %v1072 = vmul.f32 %v809, %v809
      %v1073 = vmul.f32 %v811, %v811
      %v1074 = vmul.f32 %v813, %v813
      %v1075 = vmul.f32 %v815, %v815
      %v1076 = vmul.f32 %v819, %v819
      %v1077 = vmul.f32 %v821, %v821
      %v1078 = vmul.f32 %v823, %v823
      %v1079 = vmul.f32 %v825, %v825
      %v1080 = vsel %vm827, %v997, 0.0
      %v1081 = vadd.f32 %v996, %v1080
      %1082 = vadd.xlane.f32.xlu0 %v1081
      %v1083 = vpop.xlane.xlu0 %1082
      %v1084 = vsel %vm827, %v999, 0.0
      %v1085 = vadd.f32 %v998, %v1084
      %1086 = vadd.xlane.f32.xlu0 %v1085
      %v1087 = vpop.xlane.xlu0 %1086
      %v1088 = vsel %vm827, %v1001, 0.0
      %v1089 = vadd.f32 %v1000, %v1088
      %1090 = vadd.xlane.f32.xlu0 %v1089
      %v1091 = vpop.xlane.xlu0 %1090
      %v1092 = vsel %vm827, %v1003, 0.0
      %v1093 = vadd.f32 %v1002, %v1092
      %1094 = vadd.xlane.f32.xlu0 %v1093
      %v1095 = vpop.xlane.xlu0 %1094
      %v1096 = vsel %vm827, %v1005, 0.0
      %v1097 = vadd.f32 %v1004, %v1096
      %1098 = vadd.xlane.f32.xlu0 %v1097
      %v1099 = vpop.xlane.xlu0 %1098
      %v1100 = vsel %vm827, %v1007, 0.0
      %v1101 = vadd.f32 %v1006, %v1100
      %1102 = vadd.xlane.f32.xlu0 %v1101
      %v1103 = vpop.xlane.xlu0 %1102
      %v1104 = vsel %vm827, %v1009, 0.0
      %v1105 = vadd.f32 %v1008, %v1104
      %1106 = vadd.xlane.f32.xlu0 %v1105
      %v1107 = vpop.xlane.xlu0 %1106
      %v1108 = vsel %vm827, %v1011, 0.0
      %v1109 = vadd.f32 %v1010, %v1108
      %1110 = vadd.xlane.f32.xlu0 %v1109
      %v1111 = vpop.xlane.xlu0 %1110
      %v1112 = vsel %vm827, %v1013, 0.0
      %v1113 = vadd.f32 %v1012, %v1112
      %1114 = vadd.xlane.f32.xlu0 %v1113
      %v1115 = vpop.xlane.xlu0 %1114
      %v1116 = vsel %vm827, %v1015, 0.0
      %v1117 = vadd.f32 %v1014, %v1116
      %1118 = vadd.xlane.f32.xlu0 %v1117
      %v1119 = vpop.xlane.xlu0 %1118
      %v1120 = vsel %vm827, %v1017, 0.0
      %v1121 = vadd.f32 %v1016, %v1120
      %1122 = vadd.xlane.f32.xlu0 %v1121
      %v1123 = vpop.xlane.xlu0 %1122
      %v1124 = vsel %vm827, %v1019, 0.0
      %v1125 = vadd.f32 %v1018, %v1124
      %1126 = vadd.xlane.f32.xlu0 %v1125
      %v1127 = vpop.xlane.xlu0 %1126
      %v1128 = vsel %vm827, %v1021, 0.0
      %v1129 = vadd.f32 %v1020, %v1128
      %1130 = vadd.xlane.f32.xlu0 %v1129
      %v1131 = vpop.xlane.xlu0 %1130
      %v1132 = vsel %vm827, %v1023, 0.0
      %v1133 = vadd.f32 %v1022, %v1132
      %1134 = vadd.xlane.f32.xlu0 %v1133
      %v1135 = vpop.xlane.xlu0 %1134
      %v1136 = vsel %vm827, %v1025, 0.0
      %v1137 = vadd.f32 %v1024, %v1136
      %1138 = vadd.xlane.f32.xlu0 %v1137
      %v1139 = vpop.xlane.xlu0 %1138
      %v1140 = vsel %vm827, %v1027, 0.0
      %v1141 = vadd.f32 %v1026, %v1140
      %1142 = vadd.xlane.f32.xlu0 %v1141
      %v1143 = vpop.xlane.xlu0 %1142
      %v1144 = vsel %vm827, %v1029, 0.0
      %v1145 = vadd.f32 %v1028, %v1144
      %1146 = vadd.xlane.f32.xlu0 %v1145
      %v1147 = vpop.xlane.xlu0 %1146
      %v1148 = vsel %vm827, %v1031, 0.0
      %v1149 = vadd.f32 %v1030, %v1148
      %1150 = vadd.xlane.f32.xlu0 %v1149
      %v1151 = vpop.xlane.xlu0 %1150
      %v1152 = vsel %vm827, %v1033, 0.0
      %v1153 = vadd.f32 %v1032, %v1152
      %1154 = vadd.xlane.f32.xlu0 %v1153
      %v1155 = vpop.xlane.xlu0 %1154
      %v1156 = vsel %vm827, %v1035, 0.0
      %v1157 = vadd.f32 %v1034, %v1156
      %1158 = vadd.xlane.f32.xlu0 %v1157
      %v1159 = vpop.xlane.xlu0 %1158
      %v1160 = vsel %vm827, %v1037, 0.0
      %v1161 = vadd.f32 %v1036, %v1160
      %1162 = vadd.xlane.f32.xlu0 %v1161
      %v1163 = vpop.xlane.xlu0 %1162
      %v1164 = vsel %vm827, %v1039, 0.0
      %v1165 = vadd.f32 %v1038, %v1164
      %1166 = vadd.xlane.f32.xlu0 %v1165
      %v1167 = vpop.xlane.xlu0 %1166
      %v1168 = vsel %vm827, %v1041, 0.0
      %v1169 = vadd.f32 %v1040, %v1168
      %1170 = vadd.xlane.f32.xlu0 %v1169
      %v1171 = vpop.xlane.xlu0 %1170
      %v1172 = vsel %vm827, %v1043, 0.0
      %v1173 = vadd.f32 %v1042, %v1172
      %1174 = vadd.xlane.f32.xlu0 %v1173
      %v1175 = vpop.xlane.xlu0 %1174
      %v1176 = vsel %vm827, %v1045, 0.0
      %v1177 = vadd.f32 %v1044, %v1176
      %1178 = vadd.xlane.f32.xlu0 %v1177
      %v1179 = vpop.xlane.xlu0 %1178
      %v1180 = vsel %vm827, %v1047, 0.0
      %v1181 = vadd.f32 %v1046, %v1180
      %1182 = vadd.xlane.f32.xlu0 %v1181
      %v1183 = vpop.xlane.xlu0 %1182
      %v1184 = vsel %vm827, %v1049, 0.0
      %v1185 = vadd.f32 %v1048, %v1184
      %1186 = vadd.xlane.f32.xlu0 %v1185
      %v1187 = vpop.xlane.xlu0 %1186
      %v1188 = vsel %vm827, %v1051, 0.0
      %v1189 = vadd.f32 %v1050, %v1188
      %1190 = vadd.xlane.f32.xlu0 %v1189
      %v1191 = vpop.xlane.xlu0 %1190
      %v1192 = vsel %vm827, %v1053, 0.0
      %v1193 = vadd.f32 %v1052, %v1192
      %1194 = vadd.xlane.f32.xlu0 %v1193
      %v1195 = vpop.xlane.xlu0 %1194
      %v1196 = vsel %vm827, %v1055, 0.0
      %v1197 = vadd.f32 %v1054, %v1196
      %1198 = vadd.xlane.f32.xlu0 %v1197
      %v1199 = vpop.xlane.xlu0 %1198
      %v1200 = vsel %vm827, %v1057, 0.0
      %v1201 = vadd.f32 %v1056, %v1200
      %1202 = vadd.xlane.f32.xlu0 %v1201
      %v1203 = vpop.xlane.xlu0 %1202
      %v1204 = vsel %vm827, %v1059, 0.0
      %v1205 = vadd.f32 %v1058, %v1204
      %1206 = vadd.xlane.f32.xlu0 %v1205
      %v1207 = vpop.xlane.xlu0 %1206
      %v1208 = vsel %vm827, %v1061, 0.0
      %v1209 = vadd.f32 %v1060, %v1208
      %1210 = vadd.xlane.f32.xlu0 %v1209
      %v1211 = vpop.xlane.xlu0 %1210
      %v1212 = vsel %vm827, %v1063, 0.0
      %v1213 = vadd.f32 %v1062, %v1212
      %1214 = vadd.xlane.f32.xlu0 %v1213
      %v1215 = vpop.xlane.xlu0 %1214
      %v1216 = vsel %vm827, %v1065, 0.0
      %v1217 = vadd.f32 %v1064, %v1216
      %1218 = vadd.xlane.f32.xlu0 %v1217
      %v1219 = vpop.xlane.xlu0 %1218
      %v1220 = vsel %vm827, %v1067, 0.0
      %v1221 = vadd.f32 %v1066, %v1220
      %1222 = vadd.xlane.f32.xlu0 %v1221
      %v1223 = vpop.xlane.xlu0 %1222
      %v1224 = vsel %vm827, %v1069, 0.0
      %v1225 = vadd.f32 %v1068, %v1224
      %1226 = vadd.xlane.f32.xlu0 %v1225
      %v1227 = vpop.xlane.xlu0 %1226
      %v1228 = vsel %vm827, %v1071, 0.0
      %v1229 = vadd.f32 %v1070, %v1228
      %1230 = vadd.xlane.f32.xlu0 %v1229
      %v1231 = vpop.xlane.xlu0 %1230
      %v1232 = vsel %vm827, %v1073, 0.0
      %v1233 = vadd.f32 %v1072, %v1232
      %1234 = vadd.xlane.f32.xlu0 %v1233
      %v1235 = vpop.xlane.xlu0 %1234
      %v1236 = vsel %vm827, %v1075, 0.0
      %v1237 = vadd.f32 %v1074, %v1236
      %1238 = vadd.xlane.f32.xlu0 %v1237
      %v1239 = vpop.xlane.xlu0 %1238
      %v1240 = vsel %vm827, %v1077, 0.0
      %v1241 = vadd.f32 %v1076, %v1240
      %1242 = vadd.xlane.f32.xlu0 %v1241
      %v1243 = vpop.xlane.xlu0 %1242
      %v1244 = vsel %vm827, %v1079, 0.0
      %v1245 = vadd.f32 %v1078, %v1244
      %1246 = vadd.xlane.f32.xlu0 %v1245
      %v1247 = vpop.xlane.xlu0 %1246
      %v1248 = vmul.f32 %v831, 0.0051020407
      %v1249 = vmul.f32 %v835, 0.0051020407
      %v1250 = vmul.f32 %v839, 0.0051020407
      %v1251 = vmul.f32 %v843, 0.0051020407
      %v1252 = vmul.f32 %v847, 0.0051020407
      %v1253 = vmul.f32 %v851, 0.0051020407
      %v1254 = vmul.f32 %v855, 0.0051020407
      %v1255 = vmul.f32 %v859, 0.0051020407
      %v1256 = vmul.f32 %v863, 0.0051020407
      %v1257 = vmul.f32 %v867, 0.0051020407
      %v1258 = vmul.f32 %v871, 0.0051020407
      %v1259 = vmul.f32 %v875, 0.0051020407
      %v1260 = vmul.f32 %v879, 0.0051020407
      %v1261 = vmul.f32 %v883, 0.0051020407
      %v1262 = vmul.f32 %v887, 0.0051020407
      %v1263 = vmul.f32 %v891, 0.0051020407
      %v1264 = vmul.f32 %v895, 0.0051020407
      %v1265 = vmul.f32 %v899, 0.0051020407
      %v1266 = vmul.f32 %v903, 0.0051020407
      %v1267 = vmul.f32 %v907, 0.0051020407
      %v1268 = vmul.f32 %v911, 0.0051020407
      %v1269 = vmul.f32 %v915, 0.0051020407
      %v1270 = vmul.f32 %v919, 0.0051020407
      %v1271 = vmul.f32 %v923, 0.0051020407
      %v1272 = vmul.f32 %v927, 0.0051020407
      %v1273 = vmul.f32 %v931, 0.0051020407
      %v1274 = vmul.f32 %v935, 0.0051020407
      %v1275 = vmul.f32 %v939, 0.0051020407
      %v1276 = vmul.f32 %v943, 0.0051020407
      %v1277 = vmul.f32 %v947, 0.0051020407
      %v1278 = vmul.f32 %v951, 0.0051020407
      %v1279 = vmul.f32 %v955, 0.0051020407
      %v1280 = vmul.f32 %v959, 0.0051020407
      %v1281 = vmul.f32 %v963, 0.0051020407
      %v1282 = vmul.f32 %v967, 0.0051020407
      %v1283 = vmul.f32 %v971, 0.0051020407
      %v1284 = vmul.f32 %v975, 0.0051020407
      %v1285 = vmul.f32 %v979, 0.0051020407
      %v1286 = vmul.f32 %v983, 0.0051020407
      %v1287 = vmul.f32 %v987, 0.0051020407
      %v1288 = vmul.f32 %v991, 0.0051020407
      %v1289 = vmul.f32 %v995, 0.0051020407
      %v1290 = vmul.f32 %v1083, 0.0051020407
      %v1291 = vmul.f32 %v1087, 0.0051020407
      %v1292 = vmul.f32 %v1091, 0.0051020407
      %v1293 = vmul.f32 %v1095, 0.0051020407
      %v1294 = vmul.f32 %v1099, 0.0051020407
      %v1295 = vmul.f32 %v1103, 0.0051020407
      %v1296 = vmul.f32 %v1107, 0.0051020407
      %v1297 = vmul.f32 %v1111, 0.0051020407
      %v1298 = vmul.f32 %v1115, 0.0051020407
      %v1299 = vmul.f32 %v1119, 0.0051020407
      %v1300 = vmul.f32 %v1123, 0.0051020407
      %v1301 = vmul.f32 %v1127, 0.0051020407
      %v1302 = vmul.f32 %v1131, 0.0051020407
      %v1303 = vmul.f32 %v1135, 0.0051020407
      %v1304 = vmul.f32 %v1139, 0.0051020407
      %v1305 = vmul.f32 %v1143, 0.0051020407
      %v1306 = vmul.f32 %v1147, 0.0051020407
      %v1307 = vmul.f32 %v1151, 0.0051020407
      %v1308 = vmul.f32 %v1155, 0.0051020407
      %v1309 = vmul.f32 %v1159, 0.0051020407
      %v1310 = vmul.f32 %v1163, 0.0051020407
      %v1311 = vmul.f32 %v1167, 0.0051020407
      %v1312 = vmul.f32 %v1171, 0.0051020407
      %v1313 = vmul.f32 %v1175, 0.0051020407
      %v1314 = vmul.f32 %v1179, 0.0051020407
      %v1315 = vmul.f32 %v1183, 0.0051020407
      %v1316 = vmul.f32 %v1187, 0.0051020407
      %v1317 = vmul.f32 %v1191, 0.0051020407
      %v1318 = vmul.f32 %v1195, 0.0051020407
      %v1319 = vmul.f32 %v1199, 0.0051020407
      %v1320 = vmul.f32 %v1203, 0.0051020407
      %v1321 = vmul.f32 %v1207, 0.0051020407
      %v1322 = vmul.f32 %v1211, 0.0051020407
      %v1323 = vmul.f32 %v1215, 0.0051020407
      %v1324 = vmul.f32 %v1219, 0.0051020407
      %v1325 = vmul.f32 %v1223, 0.0051020407
      %v1326 = vmul.f32 %v1227, 0.0051020407
      %v1327 = vmul.f32 %v1231, 0.0051020407
      %v1328 = vmul.f32 %v1235, 0.0051020407
      %v1329 = vmul.f32 %v1239, 0.0051020407
      %v1330 = vmul.f32 %v1243, 0.0051020407
      %v1331 = vmul.f32 %v1247, 0.0051020407
      %v1332 = vmul.f32 %v1248, %v1248
      %v1333 = vmul.f32 %v1249, %v1249
      %v1334 = vmul.f32 %v1250, %v1250
      %v1335 = vmul.f32 %v1251, %v1251
      %v1336 = vmul.f32 %v1252, %v1252
      %v1337 = vmul.f32 %v1253, %v1253
      %v1338 = vmul.f32 %v1254, %v1254
      %v1339 = vmul.f32 %v1255, %v1255
      %v1340 = vmul.f32 %v1256, %v1256
      %v1341 = vmul.f32 %v1257, %v1257
      %v1342 = vmul.f32 %v1258, %v1258
      %v1343 = vmul.f32 %v1259, %v1259
      %v1344 = vmul.f32 %v1260, %v1260
      %v1345 = vmul.f32 %v1261, %v1261
      %v1346 = vmul.f32 %v1262, %v1262
      %v1347 = vmul.f32 %v1263, %v1263
      %v1348 = vmul.f32 %v1264, %v1264
      %v1349 = vmul.f32 %v1265, %v1265
      %v1350 = vmul.f32 %v1266, %v1266
      %v1351 = vmul.f32 %v1267, %v1267
      %v1352 = vmul.f32 %v1268, %v1268
      %v1353 = vmul.f32 %v1269, %v1269
      %v1354 = vmul.f32 %v1270, %v1270
      %v1355 = vmul.f32 %v1271, %v1271
      %v1356 = vmul.f32 %v1272, %v1272
      %v1357 = vmul.f32 %v1273, %v1273
      %v1358 = vmul.f32 %v1274, %v1274
      %v1359 = vmul.f32 %v1275, %v1275
      %v1360 = vmul.f32 %v1276, %v1276
      %v1361 = vmul.f32 %v1277, %v1277
      %v1362 = vmul.f32 %v1278, %v1278
      %v1363 = vmul.f32 %v1279, %v1279
      %v1364 = vmul.f32 %v1280, %v1280
      %v1365 = vmul.f32 %v1281, %v1281
      %v1366 = vmul.f32 %v1282, %v1282
      %v1367 = vmul.f32 %v1283, %v1283
      %v1368 = vmul.f32 %v1284, %v1284
      %v1369 = vmul.f32 %v1285, %v1285
      %v1370 = vmul.f32 %v1286, %v1286
      %v1371 = vmul.f32 %v1287, %v1287
      %v1372 = vmul.f32 %v1288, %v1288
      %v1373 = vmul.f32 %v1289, %v1289
      %v1374 = vsub.f32 %v1290, %v1332
      %v1375 = vsub.f32 %v1291, %v1333
      %v1376 = vsub.f32 %v1292, %v1334
      %v1377 = vsub.f32 %v1293, %v1335
      %v1378 = vsub.f32 %v1294, %v1336
      %v1379 = vsub.f32 %v1295, %v1337
      %v1380 = vsub.f32 %v1296, %v1338
      %v1381 = vsub.f32 %v1297, %v1339
      %v1382 = vsub.f32 %v1298, %v1340
      %v1383 = vsub.f32 %v1299, %v1341
      %v1384 = vsub.f32 %v1300, %v1342
      %v1385 = vsub.f32 %v1301, %v1343
      %v1386 = vsub.f32 %v1302, %v1344
      %v1387 = vsub.f32 %v1303, %v1345
      %v1388 = vsub.f32 %v1304, %v1346
      %v1389 = vsub.f32 %v1305, %v1347
      %v1390 = vsub.f32 %v1306, %v1348
      %v1391 = vsub.f32 %v1307, %v1349
      %v1392 = vsub.f32 %v1308, %v1350
      %v1393 = vsub.f32 %v1309, %v1351
      %v1394 = vsub.f32 %v1310, %v1352
      %v1395 = vsub.f32 %v1311, %v1353
      %v1396 = vsub.f32 %v1312, %v1354
      %v1397 = vsub.f32 %v1313, %v1355
      %v1398 = vsub.f32 %v1314, %v1356
      %v1399 = vsub.f32 %v1315, %v1357
      %v1400 = vsub.f32 %v1316, %v1358
      %v1401 = vsub.f32 %v1317, %v1359
      %v1402 = vsub.f32 %v1318, %v1360
      %v1403 = vsub.f32 %v1319, %v1361
      %v1404 = vsub.f32 %v1320, %v1362
      %v1405 = vsub.f32 %v1321, %v1363
      %v1406 = vsub.f32 %v1322, %v1364
      %v1407 = vsub.f32 %v1323, %v1365
      %v1408 = vsub.f32 %v1324, %v1366
      %v1409 = vsub.f32 %v1325, %v1367
      %v1410 = vsub.f32 %v1326, %v1368
      %v1411 = vsub.f32 %v1327, %v1369
      %v1412 = vsub.f32 %v1328, %v1370
      %v1413 = vsub.f32 %v1329, %v1371
      %v1414 = vsub.f32 %v1330, %v1372
      %v1415 = vsub.f32 %v1331, %v1373
      %v1416 = vadd.f32 %v1374, 0.001
      %v1417 = vadd.f32 %v1375, 0.001
      %v1418 = vadd.f32 %v1376, 0.001
      %v1419 = vadd.f32 %v1377, 0.001
      %v1420 = vadd.f32 %v1378, 0.001
      %v1421 = vadd.f32 %v1379, 0.001
      %v1422 = vadd.f32 %v1380, 0.001
      %v1423 = vadd.f32 %v1381, 0.001
      %v1424 = vadd.f32 %v1382, 0.001
      %v1425 = vadd.f32 %v1383, 0.001
      %v1426 = vadd.f32 %v1384, 0.001
      %v1427 = vadd.f32 %v1385, 0.001
      %v1428 = vadd.f32 %v1386, 0.001
      %v1429 = vadd.f32 %v1387, 0.001
      %v1430 = vadd.f32 %v1388, 0.001
      %v1431 = vadd.f32 %v1389, 0.001
      %v1432 = vadd.f32 %v1390, 0.001
      %v1433 = vadd.f32 %v1391, 0.001
      %v1434 = vadd.f32 %v1392, 0.001
      %v1435 = vadd.f32 %v1393, 0.001
      %v1436 = vadd.f32 %v1394, 0.001
      %v1437 = vadd.f32 %v1395, 0.001
      %v1438 = vadd.f32 %v1396, 0.001
      %v1439 = vadd.f32 %v1397, 0.001
      %v1440 = vadd.f32 %v1398, 0.001
      %v1441 = vadd.f32 %v1399, 0.001
      %v1442 = vadd.f32 %v1400, 0.001
      %v1443 = vadd.f32 %v1401, 0.001
      %v1444 = vadd.f32 %v1402, 0.001
      %v1445 = vadd.f32 %v1403, 0.001
      %v1446 = vadd.f32 %v1404, 0.001
      %v1447 = vadd.f32 %v1405, 0.001
      %v1448 = vadd.f32 %v1406, 0.001
      %v1449 = vadd.f32 %v1407, 0.001
      %v1450 = vadd.f32 %v1408, 0.001
      %v1451 = vadd.f32 %v1409, 0.001
      %v1452 = vadd.f32 %v1410, 0.001
      %v1453 = vadd.f32 %v1411, 0.001
      %v1454 = vadd.f32 %v1412, 0.001
      %v1455 = vadd.f32 %v1413, 0.001
      %v1456 = vadd.f32 %v1414, 0.001
      %v1457 = vadd.f32 %v1415, 0.001
      %v1458 = vrsqrt.pop %v1416
      %v1459 = vrsqrt.pop %v1417
      %v1460 = vrsqrt.pop %v1418
      %v1461 = vrsqrt.pop %v1419
      %v1462 = vrsqrt.pop %v1420
      %v1463 = vrsqrt.pop %v1421
      %v1464 = vrsqrt.pop %v1422
      %v1465 = vrsqrt.pop %v1423
      %v1466 = vrsqrt.pop %v1424
      %v1467 = vrsqrt.pop %v1425
      %v1468 = vrsqrt.pop %v1426
      %v1469 = vrsqrt.pop %v1427
      %v1470 = vrsqrt.pop %v1428
      %v1471 = vrsqrt.pop %v1429
      %v1472 = vrsqrt.pop %v1430
      %v1473 = vrsqrt.pop %v1431
      %v1474 = vrsqrt.pop %v1432
      %v1475 = vrsqrt.pop %v1433
      %v1476 = vrsqrt.pop %v1434
      %v1477 = vrsqrt.pop %v1435
      %v1478 = vrsqrt.pop %v1436
      %v1479 = vrsqrt.pop %v1437
      %v1480 = vrsqrt.pop %v1438
      %v1481 = vrsqrt.pop %v1439
      %v1482 = vrsqrt.pop %v1440
      %v1483 = vrsqrt.pop %v1441
      %v1484 = vrsqrt.pop %v1442
      %v1485 = vrsqrt.pop %v1443
      %v1486 = vrsqrt.pop %v1444
      %v1487 = vrsqrt.pop %v1445
      %v1488 = vrsqrt.pop %v1446
      %v1489 = vrsqrt.pop %v1447
      %v1490 = vrsqrt.pop %v1448
      %v1491 = vrsqrt.pop %v1449
      %v1492 = vrsqrt.pop %v1450
      %v1493 = vrsqrt.pop %v1451
      %v1494 = vrsqrt.pop %v1452
      %v1495 = vrsqrt.pop %v1453
      %v1496 = vrsqrt.pop %v1454
      %v1497 = vrsqrt.pop %v1455
      %v1498 = vrsqrt.pop %v1456
      %v1499 = vrsqrt.pop %v1457
      %v1500 = vld [vmem:[%s259] sm:$0xff]
      %v1501 = vld [vmem:[%s259 + $0x8] sm:$0xff]
      %v1502 = vld [vmem:[%s259 + $0x10] sm:$0xff]
      %v1503 = vld [vmem:[%s259 + $0x18] sm:$0xff]
      %v1504 = vld [vmem:[%s259 + $0x20] sm:$0xff]
      %v1505 = vld [vmem:[%s259 + $0x28] sm:$0xff]
      %v1506 = vld [vmem:[%s259 + $0x30] sm:$0xff]
      %v1507 = vld [vmem:[%s259 + $0x38] sm:$0xff]
      %v1508 = vld [vmem:[%s259 + $0x40] sm:$0xff]
      %v1509 = vld [vmem:[%s259 + $0x48] sm:$0xff]
      %v1510 = vld [vmem:[%s259 + $0x50] sm:$0xff]
      %v1511 = vld [vmem:[%s259 + $0x58] sm:$0xff]
      %v1512 = vld [vmem:[%s259 + $0x60] sm:$0xff]
      %v1513 = vld [vmem:[%s259 + $0x68] sm:$0xff]
      %v1514 = vld [vmem:[%s259 + $0x70] sm:$0xff]
      %v1515 = vld [vmem:[%s259 + $0x78] sm:$0xff]
      %v1516 = vld [vmem:[%s259 + $0x80] sm:$0xff]
      %v1517 = vld [vmem:[%s259 + $0x88] sm:$0xff]
      %v1518 = vld [vmem:[%s259 + $0x90] sm:$0xff]
      %v1519 = vld [vmem:[%s259 + $0x98] sm:$0xff]
      %v1520 = vld [vmem:[%s259 + $0xa0] sm:$0xff]
      %v1521 = vld [vmem:[%s259 + $0xa8] sm:$0xff]
      %v1522 = vld [vmem:[%s259 + $0xb0] sm:$0xff]
      %v1523 = vld [vmem:[%s259 + $0xb8] sm:$0xff]
      %v1524 = vld [vmem:[%s259 + $0xc0] sm:$0xff]
      %v1525 = vld [vmem:[%s259 + $0xc8] sm:$0xff]
      %v1526 = vld [vmem:[%s259 + $0xd0] sm:$0xff]
      %v1527 = vld [vmem:[%s259 + $0xd8] sm:$0xff]
      %v1528 = vld [vmem:[%s259 + $0xe0] sm:$0xff]
      %v1529 = vld [vmem:[%s259 + $0xe8] sm:$0xff]
      %v1530 = vld [vmem:[%s259 + $0xf0] sm:$0xff]
      %v1531 = vld [vmem:[%s259 + $0xf8] sm:$0xff]
      %v1532 = vld [vmem:[%s259 + $0x100] sm:$0xff]
      %v1533 = vld [vmem:[%s259 + $0x108] sm:$0xff]
      %v1534 = vld [vmem:[%s259 + $0x110] sm:$0xff]
      %v1535 = vld [vmem:[%s259 + $0x118] sm:$0xff]
      %v1536 = vld [vmem:[%s259 + $0x120] sm:$0xff]
      %v1537 = vld [vmem:[%s259 + $0x128] sm:$0xff]
      %v1538 = vld [vmem:[%s259 + $0x130] sm:$0xff]
      %v1539 = vld [vmem:[%s259 + $0x138] sm:$0xff]
      %v1540 = vld [vmem:[%s259 + $0x140] sm:$0xff]
      %v1541 = vld [vmem:[%s259 + $0x148] sm:$0xff]
      %v1542 = vmul.f32 %v1458, %v1500
      %v1543 = vmul.f32 %v1459, %v1501
      %v1544 = vmul.f32 %v1460, %v1502
      %v1545 = vmul.f32 %v1461, %v1503
      %v1546 = vmul.f32 %v1462, %v1504
      %v1547 = vmul.f32 %v1463, %v1505
      %v1548 = vmul.f32 %v1464, %v1506
      %v1549 = vmul.f32 %v1465, %v1507
      %v1550 = vmul.f32 %v1466, %v1508
      %v1551 = vmul.f32 %v1467, %v1509
      %v1552 = vmul.f32 %v1468, %v1510
      %v1553 = vmul.f32 %v1469, %v1511
      %v1554 = vmul.f32 %v1470, %v1512
      %v1555 = vmul.f32 %v1471, %v1513
      %v1556 = vmul.f32 %v1472, %v1514
      %v1557 = vmul.f32 %v1473, %v1515
      %v1558 = vmul.f32 %v1474, %v1516
      %v1559 = vmul.f32 %v1475, %v1517
      %v1560 = vmul.f32 %v1476, %v1518
      %v1561 = vmul.f32 %v1477, %v1519
      %v1562 = vmul.f32 %v1478, %v1520
      %v1563 = vmul.f32 %v1479, %v1521
      %v1564 = vmul.f32 %v1480, %v1522
      %v1565 = vmul.f32 %v1481, %v1523
      %v1566 = vmul.f32 %v1482, %v1524
      %v1567 = vmul.f32 %v1483, %v1525
      %v1568 = vmul.f32 %v1484, %v1526
      %v1569 = vmul.f32 %v1485, %v1527
      %v1570 = vmul.f32 %v1486, %v1528
      %v1571 = vmul.f32 %v1487, %v1529
      %v1572 = vmul.f32 %v1488, %v1530
      %v1573 = vmul.f32 %v1489, %v1531
      %v1574 = vmul.f32 %v1490, %v1532
      %v1575 = vmul.f32 %v1491, %v1533
      %v1576 = vmul.f32 %v1492, %v1534
      %v1577 = vmul.f32 %v1493, %v1535
      %v1578 = vmul.f32 %v1494, %v1536
      %v1579 = vmul.f32 %v1495, %v1537
      %v1580 = vmul.f32 %v1496, %v1538
      %v1581 = vmul.f32 %v1497, %v1539
      %v1582 = vmul.f32 %v1498, %v1540
      %v1583 = vmul.f32 %v1499, %v1541
      %v1584 = vld [vmem:[%s265] sm:$0xff]
      %v1585 = vld [vmem:[%s265 + $0x8] sm:$0xff]
      %v1586 = vld [vmem:[%s265 + $0x10] sm:$0xff]
      %v1587 = vld [vmem:[%s265 + $0x18] sm:$0xff]
      %v1588 = vld [vmem:[%s265 + $0x20] sm:$0xff]
      %v1589 = vld [vmem:[%s265 + $0x28] sm:$0xff]
      %v1590 = vld [vmem:[%s265 + $0x30] sm:$0xff]
      %v1591 = vld [vmem:[%s265 + $0x38] sm:$0xff]
      %v1592 = vld [vmem:[%s265 + $0x40] sm:$0xff]
      %v1593 = vld [vmem:[%s265 + $0x48] sm:$0xff]
      %v1594 = vld [vmem:[%s265 + $0x50] sm:$0xff]
      %v1595 = vld [vmem:[%s265 + $0x58] sm:$0xff]
      %v1596 = vld [vmem:[%s265 + $0x60] sm:$0xff]
      %v1597 = vld [vmem:[%s265 + $0x68] sm:$0xff]
      %v1598 = vld [vmem:[%s265 + $0x70] sm:$0xff]
      %v1599 = vld [vmem:[%s265 + $0x78] sm:$0xff]
      %v1600 = vld [vmem:[%s265 + $0x80] sm:$0xff]
      %v1601 = vld [vmem:[%s265 + $0x88] sm:$0xff]
      %v1602 = vld [vmem:[%s265 + $0x90] sm:$0xff]
      %v1603 = vld [vmem:[%s265 + $0x98] sm:$0xff]
      %v1604 = vld [vmem:[%s265 + $0xa0] sm:$0xff]
      %v1605 = vld [vmem:[%s265 + $0xa8] sm:$0xff]
      %v1606 = vld [vmem:[%s265 + $0xb0] sm:$0xff]
      %v1607 = vld [vmem:[%s265 + $0xb8] sm:$0xff]
      %v1608 = vld [vmem:[%s265 + $0xc0] sm:$0xff]
      %v1609 = vld [vmem:[%s265 + $0xc8] sm:$0xff]
      %v1610 = vld [vmem:[%s265 + $0xd0] sm:$0xff]
      %v1611 = vld [vmem:[%s265 + $0xd8] sm:$0xff]
      %v1612 = vld [vmem:[%s265 + $0xe0] sm:$0xff]
      %v1613 = vld [vmem:[%s265 + $0xe8] sm:$0xff]
      %v1614 = vld [vmem:[%s265 + $0xf0] sm:$0xff]
      %v1615 = vld [vmem:[%s265 + $0xf8] sm:$0xff]
      %v1616 = vld [vmem:[%s265 + $0x100] sm:$0xff]
      %v1617 = vld [vmem:[%s265 + $0x108] sm:$0xff]
      %v1618 = vld [vmem:[%s265 + $0x110] sm:$0xff]
      %v1619 = vld [vmem:[%s265 + $0x118] sm:$0xff]
      %v1620 = vld [vmem:[%s265 + $0x120] sm:$0xff]
      %v1621 = vld [vmem:[%s265 + $0x128] sm:$0xff]
      %v1622 = vld [vmem:[%s265 + $0x130] sm:$0xff]
      %v1623 = vld [vmem:[%s265 + $0x138] sm:$0xff]
      %v1624 = vld [vmem:[%s265 + $0x140] sm:$0xff]
      %v1625 = vld [vmem:[%s265 + $0x148] sm:$0xff]
      %v1626 = vmul.f32 %v1248, %v1542
      %v1627 = vmul.f32 %v1249, %v1543
      %v1628 = vmul.f32 %v1250, %v1544
      %v1629 = vmul.f32 %v1251, %v1545
      %v1630 = vmul.f32 %v1252, %v1546
      %v1631 = vmul.f32 %v1253, %v1547
      %v1632 = vmul.f32 %v1254, %v1548
      %v1633 = vmul.f32 %v1255, %v1549
      %v1634 = vmul.f32 %v1256, %v1550
      %v1635 = vmul.f32 %v1257, %v1551
      %v1636 = vmul.f32 %v1258, %v1552
      %v1637 = vmul.f32 %v1259, %v1553
      %v1638 = vmul.f32 %v1260, %v1554
      %v1639 = vmul.f32 %v1261, %v1555
      %v1640 = vmul.f32 %v1262, %v1556
      %v1641 = vmul.f32 %v1263, %v1557
      %v1642 = vmul.f32 %v1264, %v1558
      %v1643 = vmul.f32 %v1265, %v1559
      %v1644 = vmul.f32 %v1266, %v1560
      %v1645 = vmul.f32 %v1267, %v1561
      %v1646 = vmul.f32 %v1268, %v1562
      %v1647 = vmul.f32 %v1269, %v1563
      %v1648 = vmul.f32 %v1270, %v1564
      %v1649 = vmul.f32 %v1271, %v1565
      %v1650 = vmul.f32 %v1272, %v1566
      %v1651 = vmul.f32 %v1273, %v1567
      %v1652 = vmul.f32 %v1274, %v1568
      %v1653 = vmul.f32 %v1275, %v1569
      %v1654 = vmul.f32 %v1276, %v1570
      %v1655 = vmul.f32 %v1277, %v1571
      %v1656 = vmul.f32 %v1278, %v1572
      %v1657 = vmul.f32 %v1279, %v1573
      %v1658 = vmul.f32 %v1280, %v1574
      %v1659 = vmul.f32 %v1281, %v1575
      %v1660 = vmul.f32 %v1282, %v1576
      %v1661 = vmul.f32 %v1283, %v1577
      %v1662 = vmul.f32 %v1284, %v1578
      %v1663 = vmul.f32 %v1285, %v1579
      %v1664 = vmul.f32 %v1286, %v1580
      %v1665 = vmul.f32 %v1287, %v1581
      %v1666 = vmul.f32 %v1288, %v1582
      %v1667 = vmul.f32 %v1289, %v1583
      %v1668 = vsub.f32 %v1584, %v1626
      %v1669 = vsub.f32 %v1585, %v1627
      %v1670 = vsub.f32 %v1586, %v1628
      %v1671 = vsub.f32 %v1587, %v1629
      %v1672 = vsub.f32 %v1588, %v1630
      %v1673 = vsub.f32 %v1589, %v1631
      %v1674 = vsub.f32 %v1590, %v1632
      %v1675 = vsub.f32 %v1591, %v1633
      %v1676 = vsub.f32 %v1592, %v1634
      %v1677 = vsub.f32 %v1593, %v1635
      %v1678 = vsub.f32 %v1594, %v1636
      %v1679 = vsub.f32 %v1595, %v1637
      %v1680 = vsub.f32 %v1596, %v1638
      %v1681 = vsub.f32 %v1597, %v1639
      %v1682 = vsub.f32 %v1598, %v1640
      %v1683 = vsub.f32 %v1599, %v1641
      %v1684 = vsub.f32 %v1600, %v1642
      %v1685 = vsub.f32 %v1601, %v1643
      %v1686 = vsub.f32 %v1602, %v1644
      %v1687 = vsub.f32 %v1603, %v1645
      %v1688 = vsub.f32 %v1604, %v1646
      %v1689 = vsub.f32 %v1605, %v1647
      %v1690 = vsub.f32 %v1606, %v1648
      %v1691 = vsub.f32 %v1607, %v1649
      %v1692 = vsub.f32 %v1608, %v1650
      %v1693 = vsub.f32 %v1609, %v1651
      %v1694 = vsub.f32 %v1610, %v1652
      %v1695 = vsub.f32 %v1611, %v1653
      %v1696 = vsub.f32 %v1612, %v1654
      %v1697 = vsub.f32 %v1613, %v1655
      %v1698 = vsub.f32 %v1614, %v1656
      %v1699 = vsub.f32 %v1615, %v1657
      %v1700 = vsub.f32 %v1616, %v1658
      %v1701 = vsub.f32 %v1617, %v1659
      %v1702 = vsub.f32 %v1618, %v1660
      %v1703 = vsub.f32 %v1619, %v1661
      %v1704 = vsub.f32 %v1620, %v1662
      %v1705 = vsub.f32 %v1621, %v1663
      %v1706 = vsub.f32 %v1622, %v1664
      %v1707 = vsub.f32 %v1623, %v1665
      %v1708 = vsub.f32 %v1624, %v1666
      %v1709 = vsub.f32 %v1625, %v1667
      %1711 = vset.pattern.permute.xlu0 0
      %1712 = vperm.xlu0 %1711, %v1542
      %v1713 = vpop.permute.xlu0 %1712
      %1716 = vset.pattern.permute.xlu0 0
      %1717 = vperm.xlu0 %1716, %v1543
      %v1718 = vpop.permute.xlu0 %1717
      %1721 = vset.pattern.permute.xlu0 0
      %1722 = vperm.xlu0 %1721, %v1544
      %v1723 = vpop.permute.xlu0 %1722
      %1726 = vset.pattern.permute.xlu0 0
      %1727 = vperm.xlu0 %1726, %v1545
      %v1728 = vpop.permute.xlu0 %1727
      %1731 = vset.pattern.permute.xlu0 0
      %1732 = vperm.xlu0 %1731, %v1546
      %v1733 = vpop.permute.xlu0 %1732
      %1736 = vset.pattern.permute.xlu0 0
      %1737 = vperm.xlu0 %1736, %v1547
      %v1738 = vpop.permute.xlu0 %1737
      %1741 = vset.pattern.permute.xlu0 0
      %1742 = vperm.xlu0 %1741, %v1548
      %v1743 = vpop.permute.xlu0 %1742
      %1746 = vset.pattern.permute.xlu0 0
      %1747 = vperm.xlu0 %1746, %v1549
      %v1748 = vpop.permute.xlu0 %1747
      %1751 = vset.pattern.permute.xlu0 0
      %1752 = vperm.xlu0 %1751, %v1550
      %v1753 = vpop.permute.xlu0 %1752
      %1756 = vset.pattern.permute.xlu0 0
      %1757 = vperm.xlu0 %1756, %v1551
      %v1758 = vpop.permute.xlu0 %1757
      %1761 = vset.pattern.permute.xlu0 0
      %1762 = vperm.xlu0 %1761, %v1552
      %v1763 = vpop.permute.xlu0 %1762
      %1766 = vset.pattern.permute.xlu0 0
      %1767 = vperm.xlu0 %1766, %v1553
      %v1768 = vpop.permute.xlu0 %1767
      %1771 = vset.pattern.permute.xlu0 0
      %1772 = vperm.xlu0 %1771, %v1554
      %v1773 = vpop.permute.xlu0 %1772
      %1776 = vset.pattern.permute.xlu0 0
      %1777 = vperm.xlu0 %1776, %v1555
      %v1778 = vpop.permute.xlu0 %1777
      %1781 = vset.pattern.permute.xlu0 0
      %1782 = vperm.xlu0 %1781, %v1556
      %v1783 = vpop.permute.xlu0 %1782
      %1786 = vset.pattern.permute.xlu0 0
      %1787 = vperm.xlu0 %1786, %v1557
      %v1788 = vpop.permute.xlu0 %1787
      %1791 = vset.pattern.permute.xlu0 0
      %1792 = vperm.xlu0 %1791, %v1558
      %v1793 = vpop.permute.xlu0 %1792
      %1796 = vset.pattern.permute.xlu0 0
      %1797 = vperm.xlu0 %1796, %v1559
      %v1798 = vpop.permute.xlu0 %1797
      %1801 = vset.pattern.permute.xlu0 0
      %1802 = vperm.xlu0 %1801, %v1560
      %v1803 = vpop.permute.xlu0 %1802
      %1806 = vset.pattern.permute.xlu0 0
      %1807 = vperm.xlu0 %1806, %v1561
      %v1808 = vpop.permute.xlu0 %1807
      %1811 = vset.pattern.permute.xlu0 0
      %1812 = vperm.xlu0 %1811, %v1562
      %v1813 = vpop.permute.xlu0 %1812
      %1816 = vset.pattern.permute.xlu0 0
      %1817 = vperm.xlu0 %1816, %v1563
      %v1818 = vpop.permute.xlu0 %1817
      %1821 = vset.pattern.permute.xlu0 0
      %1822 = vperm.xlu0 %1821, %v1564
      %v1823 = vpop.permute.xlu0 %1822
      %1826 = vset.pattern.permute.xlu0 0
      %1827 = vperm.xlu0 %1826, %v1565
      %v1828 = vpop.permute.xlu0 %1827
      %1831 = vset.pattern.permute.xlu0 0
      %1832 = vperm.xlu0 %1831, %v1566
      %v1833 = vpop.permute.xlu0 %1832
      %1836 = vset.pattern.permute.xlu0 0
      %1837 = vperm.xlu0 %1836, %v1567
      %v1838 = vpop.permute.xlu0 %1837
      %1841 = vset.pattern.permute.xlu0 0
      %1842 = vperm.xlu0 %1841, %v1568
      %v1843 = vpop.permute.xlu0 %1842
      %1846 = vset.pattern.permute.xlu0 0
      %1847 = vperm.xlu0 %1846, %v1569
      %v1848 = vpop.permute.xlu0 %1847
      %1851 = vset.pattern.permute.xlu0 0
      %1852 = vperm.xlu0 %1851, %v1570
      %v1853 = vpop.permute.xlu0 %1852
      %1856 = vset.pattern.permute.xlu0 0
      %1857 = vperm.xlu0 %1856, %v1571
      %v1858 = vpop.permute.xlu0 %1857
      %1861 = vset.pattern.permute.xlu0 0
      %1862 = vperm.xlu0 %1861, %v1572
      %v1863 = vpop.permute.xlu0 %1862
      %1866 = vset.pattern.permute.xlu0 0
      %1867 = vperm.xlu0 %1866, %v1573
      %v1868 = vpop.permute.xlu0 %1867
      %1871 = vset.pattern.permute.xlu0 0
      %1872 = vperm.xlu0 %1871, %v1574
      %v1873 = vpop.permute.xlu0 %1872
      %1876 = vset.pattern.permute.xlu0 0
      %1877 = vperm.xlu0 %1876, %v1575
      %v1878 = vpop.permute.xlu0 %1877
      %1881 = vset.pattern.permute.xlu0 0
      %1882 = vperm.xlu0 %1881, %v1576
      %v1883 = vpop.permute.xlu0 %1882
      %1886 = vset.pattern.permute.xlu0 0
      %1887 = vperm.xlu0 %1886, %v1577
      %v1888 = vpop.permute.xlu0 %1887
      %1891 = vset.pattern.permute.xlu0 0
      %1892 = vperm.xlu0 %1891, %v1578
      %v1893 = vpop.permute.xlu0 %1892
      %1896 = vset.pattern.permute.xlu0 0
      %1897 = vperm.xlu0 %1896, %v1579
      %v1898 = vpop.permute.xlu0 %1897
      %1901 = vset.pattern.permute.xlu0 0
      %1902 = vperm.xlu0 %1901, %v1580
      %v1903 = vpop.permute.xlu0 %1902
      %1906 = vset.pattern.permute.xlu0 0
      %1907 = vperm.xlu0 %1906, %v1581
      %v1908 = vpop.permute.xlu0 %1907
      %1911 = vset.pattern.permute.xlu0 0
      %1912 = vperm.xlu0 %1911, %v1582
      %v1913 = vpop.permute.xlu0 %1912
      %1916 = vset.pattern.permute.xlu0 0
      %1917 = vperm.xlu0 %1916, %v1583
      %v1918 = vpop.permute.xlu0 %1917
      %v1920 = vmul.f32 %v619, %v1713
      %v1921 = vmul.f32 %v621, %v1713
      %v1922 = vmul.f32 %v623, %v1718
      %v1923 = vmul.f32 %v625, %v1718
      %v1924 = vmul.f32 %v629, %v1723
      %v1925 = vmul.f32 %v631, %v1723
      %v1926 = vmul.f32 %v633, %v1728
      %v1927 = vmul.f32 %v635, %v1728
      %v1928 = vmul.f32 %v639, %v1733
      %v1929 = vmul.f32 %v641, %v1733
      %v1930 = vmul.f32 %v643, %v1738
      %v1931 = vmul.f32 %v645, %v1738
      %v1932 = vmul.f32 %v649, %v1743
      %v1933 = vmul.f32 %v651, %v1743
      %v1934 = vmul.f32 %v653, %v1748
      %v1935 = vmul.f32 %v655, %v1748
      %v1936 = vmul.f32 %v659, %v1753
      %v1937 = vmul.f32 %v661, %v1753
      %v1938 = vmul.f32 %v663, %v1758
      %v1939 = vmul.f32 %v665, %v1758
      %v1940 = vmul.f32 %v669, %v1763
      %v1941 = vmul.f32 %v671, %v1763
      %v1942 = vmul.f32 %v673, %v1768
      %v1943 = vmul.f32 %v675, %v1768
      %v1944 = vmul.f32 %v679, %v1773
      %v1945 = vmul.f32 %v681, %v1773
      %v1946 = vmul.f32 %v683, %v1778
      %v1947 = vmul.f32 %v685, %v1778
      %v1948 = vmul.f32 %v689, %v1783
      %v1949 = vmul.f32 %v691, %v1783
      %v1950 = vmul.f32 %v693, %v1788
      %v1951 = vmul.f32 %v695, %v1788
      %v1952 = vmul.f32 %v699, %v1793
      %v1953 = vmul.f32 %v701, %v1793
      %v1954 = vmul.f32 %v703, %v1798
      %v1955 = vmul.f32 %v705, %v1798
      %v1956 = vmul.f32 %v709, %v1803
      %v1957 = vmul.f32 %v711, %v1803
      %v1958 = vmul.f32 %v713, %v1808
      %v1959 = vmul.f32 %v715, %v1808
      %v1960 = vmul.f32 %v719, %v1813
      %v1961 = vmul.f32 %v721, %v1813
      %v1962 = vmul.f32 %v723, %v1818
      %v1963 = vmul.f32 %v725, %v1818
      %v1964 = vmul.f32 %v729, %v1823
      %v1965 = vmul.f32 %v731, %v1823
      %v1966 = vmul.f32 %v733, %v1828
      %v1967 = vmul.f32 %v735, %v1828
      %v1968 = vmul.f32 %v739, %v1833
      %v1969 = vmul.f32 %v741, %v1833
      %v1970 = vmul.f32 %v743, %v1838
      %v1971 = vmul.f32 %v745, %v1838
      %v1972 = vmul.f32 %v749, %v1843
      %v1973 = vmul.f32 %v751, %v1843
      %v1974 = vmul.f32 %v753, %v1848
      %v1975 = vmul.f32 %v755, %v1848
      %v1976 = vmul.f32 %v759, %v1853
      %v1977 = vmul.f32 %v761, %v1853
      %v1978 = vmul.f32 %v763, %v1858
      %v1979 = vmul.f32 %v765, %v1858
      %v1980 = vmul.f32 %v769, %v1863
      %v1981 = vmul.f32 %v771, %v1863
      %v1982 = vmul.f32 %v773, %v1868
      %v1983 = vmul.f32 %v775, %v1868
      %v1984 = vmul.f32 %v779, %v1873
      %v1985 = vmul.f32 %v781, %v1873
      %v1986 = vmul.f32 %v783, %v1878
      %v1987 = vmul.f32 %v785, %v1878
      %v1988 = vmul.f32 %v789, %v1883
      %v1989 = vmul.f32 %v791, %v1883
      %v1990 = vmul.f32 %v793, %v1888
      %v1991 = vmul.f32 %v795, %v1888
      %v1992 = vmul.f32 %v799, %v1893
      %v1993 = vmul.f32 %v801, %v1893
      %v1994 = vmul.f32 %v803, %v1898
      %v1995 = vmul.f32 %v805, %v1898
      %v1996 = vmul.f32 %v809, %v1903
      %v1997 = vmul.f32 %v811, %v1903
      %v1998 = vmul.f32 %v813, %v1908
      %v1999 = vmul.f32 %v815, %v1908
      %v2000 = vmul.f32 %v819, %v1913
      %v2001 = vmul.f32 %v821, %v1913
      %v2002 = vmul.f32 %v823, %v1918
      %v2003 = vmul.f32 %v825, %v1918
      %2005 = vset.pattern.permute.xlu0 0
      %2006 = vperm.xlu0 %2005, %v1668
      %v2007 = vpop.permute.xlu0 %2006
      %2010 = vset.pattern.permute.xlu0 0
      %2011 = vperm.xlu0 %2010, %v1669
      %v2012 = vpop.permute.xlu0 %2011
      %2015 = vset.pattern.permute.xlu0 0
      %2016 = vperm.xlu0 %2015, %v1670
      %v2017 = vpop.permute.xlu0 %2016
      %2020 = vset.pattern.permute.xlu0 0
      %2021 = vperm.xlu0 %2020, %v1671
      %v2022 = vpop.permute.xlu0 %2021
      %2025 = vset.pattern.permute.xlu0 0
      %2026 = vperm.xlu0 %2025, %v1672
      %v2027 = vpop.permute.xlu0 %2026
      %2030 = vset.pattern.permute.xlu0 0
      %2031 = vperm.xlu0 %2030, %v1673
      %v2032 = vpop.permute.xlu0 %2031
      %2035 = vset.pattern.permute.xlu0 0
      %2036 = vperm.xlu0 %2035, %v1674
      %v2037 = vpop.permute.xlu0 %2036
      %2040 = vset.pattern.permute.xlu0 0
      %2041 = vperm.xlu0 %2040, %v1675
      %v2042 = vpop.permute.xlu0 %2041
      %2045 = vset.pattern.permute.xlu0 0
      %2046 = vperm.xlu0 %2045, %v1676
      %v2047 = vpop.permute.xlu0 %2046
      %2050 = vset.pattern.permute.xlu0 0
      %2051 = vperm.xlu0 %2050, %v1677
      %v2052 = vpop.permute.xlu0 %2051
      %2055 = vset.pattern.permute.xlu0 0
      %2056 = vperm.xlu0 %2055, %v1678
      %v2057 = vpop.permute.xlu0 %2056
      %2060 = vset.pattern.permute.xlu0 0
      %2061 = vperm.xlu0 %2060, %v1679
      %v2062 = vpop.permute.xlu0 %2061
      %2065 = vset.pattern.permute.xlu0 0
      %2066 = vperm.xlu0 %2065, %v1680
      %v2067 = vpop.permute.xlu0 %2066
      %2070 = vset.pattern.permute.xlu0 0
      %2071 = vperm.xlu0 %2070, %v1681
      %v2072 = vpop.permute.xlu0 %2071
      %2075 = vset.pattern.permute.xlu0 0
      %2076 = vperm.xlu0 %2075, %v1682
      %v2077 = vpop.permute.xlu0 %2076
      %2080 = vset.pattern.permute.xlu0 0
      %2081 = vperm.xlu0 %2080, %v1683
      %v2082 = vpop.permute.xlu0 %2081
      %2085 = vset.pattern.permute.xlu0 0
      %2086 = vperm.xlu0 %2085, %v1684
      %v2087 = vpop.permute.xlu0 %2086
      %2090 = vset.pattern.permute.xlu0 0
      %2091 = vperm.xlu0 %2090, %v1685
      %v2092 = vpop.permute.xlu0 %2091
      %2095 = vset.pattern.permute.xlu0 0
      %2096 = vperm.xlu0 %2095, %v1686
      %v2097 = vpop.permute.xlu0 %2096
      %2100 = vset.pattern.permute.xlu0 0
      %2101 = vperm.xlu0 %2100, %v1687
      %v2102 = vpop.permute.xlu0 %2101
      %2105 = vset.pattern.permute.xlu0 0
      %2106 = vperm.xlu0 %2105, %v1688
      %v2107 = vpop.permute.xlu0 %2106
      %2110 = vset.pattern.permute.xlu0 0
      %2111 = vperm.xlu0 %2110, %v1689
      %v2112 = vpop.permute.xlu0 %2111
      %2115 = vset.pattern.permute.xlu0 0
      %2116 = vperm.xlu0 %2115, %v1690
      %v2117 = vpop.permute.xlu0 %2116
      %2120 = vset.pattern.permute.xlu0 0
      %2121 = vperm.xlu0 %2120, %v1691
      %v2122 = vpop.permute.xlu0 %2121
      %2125 = vset.pattern.permute.xlu0 0
      %2126 = vperm.xlu0 %2125, %v1692
      %v2127 = vpop.permute.xlu0 %2126
      %2130 = vset.pattern.permute.xlu0 0
      %2131 = vperm.xlu0 %2130, %v1693
      %v2132 = vpop.permute.xlu0 %2131
      %2135 = vset.pattern.permute.xlu0 0
      %2136 = vperm.xlu0 %2135, %v1694
      %v2137 = vpop.permute.xlu0 %2136
      %2140 = vset.pattern.permute.xlu0 0
      %2141 = vperm.xlu0 %2140, %v1695
      %v2142 = vpop.permute.xlu0 %2141
      %2145 = vset.pattern.permute.xlu0 0
      %2146 = vperm.xlu0 %2145, %v1696
      %v2147 = vpop.permute.xlu0 %2146
      %2150 = vset.pattern.permute.xlu0 0
      %2151 = vperm.xlu0 %2150, %v1697
      %v2152 = vpop.permute.xlu0 %2151
      %2155 = vset.pattern.permute.xlu0 0
      %2156 = vperm.xlu0 %2155, %v1698
      %v2157 = vpop.permute.xlu0 %2156
      %2160 = vset.pattern.permute.xlu0 0
      %2161 = vperm.xlu0 %2160, %v1699
      %v2162 = vpop.permute.xlu0 %2161
      %2165 = vset.pattern.permute.xlu0 0
      %2166 = vperm.xlu0 %2165, %v1700
      %v2167 = vpop.permute.xlu0 %2166
      %2170 = vset.pattern.permute.xlu0 0
      %2171 = vperm.xlu0 %2170, %v1701
      %v2172 = vpop.permute.xlu0 %2171
      %2175 = vset.pattern.permute.xlu0 0
      %2176 = vperm.xlu0 %2175, %v1702
      %v2177 = vpop.permute.xlu0 %2176
      %2180 = vset.pattern.permute.xlu0 0
      %2181 = vperm.xlu0 %2180, %v1703
      %v2182 = vpop.permute.xlu0 %2181
      %2185 = vset.pattern.permute.xlu0 0
      %2186 = vperm.xlu0 %2185, %v1704
      %v2187 = vpop.permute.xlu0 %2186
      %2190 = vset.pattern.permute.xlu0 0
      %2191 = vperm.xlu0 %2190, %v1705
      %v2192 = vpop.permute.xlu0 %2191
      %2195 = vset.pattern.permute.xlu0 0
      %2196 = vperm.xlu0 %2195, %v1706
      %v2197 = vpop.permute.xlu0 %2196
      %2200 = vset.pattern.permute.xlu0 0
      %2201 = vperm.xlu0 %2200, %v1707
      %v2202 = vpop.permute.xlu0 %2201
      %2205 = vset.pattern.permute.xlu0 0
      %2206 = vperm.xlu0 %2205, %v1708
      %v2207 = vpop.permute.xlu0 %2206
      %2210 = vset.pattern.permute.xlu0 0
      %2211 = vperm.xlu0 %2210, %v1709
      %v2212 = vpop.permute.xlu0 %2211
      %v2214 = vadd.f32 %v1920, %v2007
      %v2215 = vadd.f32 %v1921, %v2007
      %v2216 = vadd.f32 %v1922, %v2012
      %v2217 = vadd.f32 %v1923, %v2012
      %v2218 = vadd.f32 %v1924, %v2017
      %v2219 = vadd.f32 %v1925, %v2017
      %v2220 = vadd.f32 %v1926, %v2022
      %v2221 = vadd.f32 %v1927, %v2022
      %v2222 = vadd.f32 %v1928, %v2027
      %v2223 = vadd.f32 %v1929, %v2027
      %v2224 = vadd.f32 %v1930, %v2032
      %v2225 = vadd.f32 %v1931, %v2032
      %v2226 = vadd.f32 %v1932, %v2037
      %v2227 = vadd.f32 %v1933, %v2037
      %v2228 = vadd.f32 %v1934, %v2042
      %v2229 = vadd.f32 %v1935, %v2042
      %v2230 = vadd.f32 %v1936, %v2047
      %v2231 = vadd.f32 %v1937, %v2047
      %v2232 = vadd.f32 %v1938, %v2052
      %v2233 = vadd.f32 %v1939, %v2052
      %v2234 = vadd.f32 %v1940, %v2057
      %v2235 = vadd.f32 %v1941, %v2057
      %v2236 = vadd.f32 %v1942, %v2062
      %v2237 = vadd.f32 %v1943, %v2062
      %v2238 = vadd.f32 %v1944, %v2067
      %v2239 = vadd.f32 %v1945, %v2067
      %v2240 = vadd.f32 %v1946, %v2072
      %v2241 = vadd.f32 %v1947, %v2072
      %v2242 = vadd.f32 %v1948, %v2077
      %v2243 = vadd.f32 %v1949, %v2077
      %v2244 = vadd.f32 %v1950, %v2082
      %v2245 = vadd.f32 %v1951, %v2082
      %v2246 = vadd.f32 %v1952, %v2087
      %v2247 = vadd.f32 %v1953, %v2087
      %v2248 = vadd.f32 %v1954, %v2092
      %v2249 = vadd.f32 %v1955, %v2092
      %v2250 = vadd.f32 %v1956, %v2097
      %v2251 = vadd.f32 %v1957, %v2097
      %v2252 = vadd.f32 %v1958, %v2102
      %v2253 = vadd.f32 %v1959, %v2102
      %v2254 = vadd.f32 %v1960, %v2107
      %v2255 = vadd.f32 %v1961, %v2107
      %v2256 = vadd.f32 %v1962, %v2112
      %v2257 = vadd.f32 %v1963, %v2112
      %v2258 = vadd.f32 %v1964, %v2117
      %v2259 = vadd.f32 %v1965, %v2117
      %v2260 = vadd.f32 %v1966, %v2122
      %v2261 = vadd.f32 %v1967, %v2122
      %v2262 = vadd.f32 %v1968, %v2127
      %v2263 = vadd.f32 %v1969, %v2127
      %v2264 = vadd.f32 %v1970, %v2132
      %v2265 = vadd.f32 %v1971, %v2132
      %v2266 = vadd.f32 %v1972, %v2137
      %v2267 = vadd.f32 %v1973, %v2137
      %v2268 = vadd.f32 %v1974, %v2142
      %v2269 = vadd.f32 %v1975, %v2142
      %v2270 = vadd.f32 %v1976, %v2147
      %v2271 = vadd.f32 %v1977, %v2147
      %v2272 = vadd.f32 %v1978, %v2152
      %v2273 = vadd.f32 %v1979, %v2152
      %v2274 = vadd.f32 %v1980, %v2157
      %v2275 = vadd.f32 %v1981, %v2157
      %v2276 = vadd.f32 %v1982, %v2162
      %v2277 = vadd.f32 %v1983, %v2162
      %v2278 = vadd.f32 %v1984, %v2167
      %v2279 = vadd.f32 %v1985, %v2167
      %v2280 = vadd.f32 %v1986, %v2172
      %v2281 = vadd.f32 %v1987, %v2172
      %v2282 = vadd.f32 %v1988, %v2177
      %v2283 = vadd.f32 %v1989, %v2177
      %v2284 = vadd.f32 %v1990, %v2182
      %v2285 = vadd.f32 %v1991, %v2182
      %v2286 = vadd.f32 %v1992, %v2187
      %v2287 = vadd.f32 %v1993, %v2187
      %v2288 = vadd.f32 %v1994, %v2192
      %v2289 = vadd.f32 %v1995, %v2192
      %v2290 = vadd.f32 %v1996, %v2197
      %v2291 = vadd.f32 %v1997, %v2197
      %v2292 = vadd.f32 %v1998, %v2202
      %v2293 = vadd.f32 %v1999, %v2202
      %v2294 = vadd.f32 %v2000, %v2207
      %v2295 = vadd.f32 %v2001, %v2207
      %v2296 = vadd.f32 %v2002, %v2212
      %v2297 = vadd.f32 %v2003, %v2212
      %2298 = vst [vmem:[%s272] sm:$0xff] %v2214
      %2299 = vst.msk [vmem:[%s272 + $0x8] sm:$0xff] %vm827, %v2215
      %2300 = vst [vmem:[%s272 + $0x10] sm:$0xff] %v2216
      %2301 = vst.msk [vmem:[%s272 + $0x18] sm:$0xff] %vm827, %v2217
      %2302 = vst [vmem:[%s272 + $0x20] sm:$0xff] %v2218
      %2303 = vst.msk [vmem:[%s272 + $0x28] sm:$0xff] %vm827, %v2219
      %2304 = vst [vmem:[%s272 + $0x30] sm:$0xff] %v2220
      %2305 = vst.msk [vmem:[%s272 + $0x38] sm:$0xff] %vm827, %v2221
      %2306 = vst [vmem:[%s272 + $0x40] sm:$0xff] %v2222
      %2307 = vst.msk [vmem:[%s272 + $0x48] sm:$0xff] %vm827, %v2223
      %2308 = vst [vmem:[%s272 + $0x50] sm:$0xff] %v2224
      %2309 = vst.msk [vmem:[%s272 + $0x58] sm:$0xff] %vm827, %v2225
      %2310 = vst [vmem:[%s272 + $0x60] sm:$0xff] %v2226
      %2311 = vst.msk [vmem:[%s272 + $0x68] sm:$0xff] %vm827, %v2227
      %2312 = vst [vmem:[%s272 + $0x70] sm:$0xff] %v2228
      %2313 = vst.msk [vmem:[%s272 + $0x78] sm:$0xff] %vm827, %v2229
      %2314 = vst [vmem:[%s272 + $0x80] sm:$0xff] %v2230
      %2315 = vst.msk [vmem:[%s272 + $0x88] sm:$0xff] %vm827, %v2231
      %2316 = vst [vmem:[%s272 + $0x90] sm:$0xff] %v2232
      %2317 = vst.msk [vmem:[%s272 + $0x98] sm:$0xff] %vm827, %v2233
      %2318 = vst [vmem:[%s272 + $0xa0] sm:$0xff] %v2234
      %2319 = vst.msk [vmem:[%s272 + $0xa8] sm:$0xff] %vm827, %v2235
      %2320 = vst [vmem:[%s272 + $0xb0] sm:$0xff] %v2236
      %2321 = vst.msk [vmem:[%s272 + $0xb8] sm:$0xff] %vm827, %v2237
      %2322 = vst [vmem:[%s272 + $0xc0] sm:$0xff] %v2238
      %2323 = vst.msk [vmem:[%s272 + $0xc8] sm:$0xff] %vm827, %v2239
      %2324 = vst [vmem:[%s272 + $0xd0] sm:$0xff] %v2240
      %2325 = vst.msk [vmem:[%s272 + $0xd8] sm:$0xff] %vm827, %v2241
      %2326 = vst [vmem:[%s272 + $0xe0] sm:$0xff] %v2242
      %2327 = vst.msk [vmem:[%s272 + $0xe8] sm:$0xff] %vm827, %v2243
      %2328 = vst [vmem:[%s272 + $0xf0] sm:$0xff] %v2244
      %2329 = vst.msk [vmem:[%s272 + $0xf8] sm:$0xff] %vm827, %v2245
      %2330 = vst [vmem:[%s272 + $0x100] sm:$0xff] %v2246
      %2331 = vst.msk [vmem:[%s272 + $0x108] sm:$0xff] %vm827, %v2247
      %2332 = vst [vmem:[%s272 + $0x110] sm:$0xff] %v2248
      %2333 = vst.msk [vmem:[%s272 + $0x118] sm:$0xff] %vm827, %v2249
      %2334 = vst [vmem:[%s272 + $0x120] sm:$0xff] %v2250
      %2335 = vst.msk [vmem:[%s272 + $0x128] sm:$0xff] %vm827, %v2251
      %2336 = vst [vmem:[%s272 + $0x130] sm:$0xff] %v2252
      %2337 = vst.msk [vmem:[%s272 + $0x138] sm:$0xff] %vm827, %v2253
      %2338 = vst [vmem:[%s272 + $0x140] sm:$0xff] %v2254
      %2339 = vst.msk [vmem:[%s272 + $0x148] sm:$0xff] %vm827, %v2255
      %2340 = vst [vmem:[%s272 + $0x150] sm:$0xff] %v2256
      %2341 = vst.msk [vmem:[%s272 + $0x158] sm:$0xff] %vm827, %v2257
      %2342 = vst [vmem:[%s272 + $0x160] sm:$0xff] %v2258
      %2343 = vst.msk [vmem:[%s272 + $0x168] sm:$0xff] %vm827, %v2259
      %2344 = vst [vmem:[%s272 + $0x170] sm:$0xff] %v2260
      %2345 = vst.msk [vmem:[%s272 + $0x178] sm:$0xff] %vm827, %v2261
      %2346 = vst [vmem:[%s272 + $0x180] sm:$0xff] %v2262
      %2347 = vst.msk [vmem:[%s272 + $0x188] sm:$0xff] %vm827, %v2263
      %2348 = vst [vmem:[%s272 + $0x190] sm:$0xff] %v2264
      %2349 = vst.msk [vmem:[%s272 + $0x198] sm:$0xff] %vm827, %v2265
      %2350 = vst [vmem:[%s272 + $0x1a0] sm:$0xff] %v2266
      %2351 = vst.msk [vmem:[%s272 + $0x1a8] sm:$0xff] %vm827, %v2267
      %2352 = vst [vmem:[%s272 + $0x1b0] sm:$0xff] %v2268
      %2353 = vst.msk [vmem:[%s272 + $0x1b8] sm:$0xff] %vm827, %v2269
      %2354 = vst [vmem:[%s272 + $0x1c0] sm:$0xff] %v2270
      %2355 = vst.msk [vmem:[%s272 + $0x1c8] sm:$0xff] %vm827, %v2271
      %2356 = vst [vmem:[%s272 + $0x1d0] sm:$0xff] %v2272
      %2357 = vst.msk [vmem:[%s272 + $0x1d8] sm:$0xff] %vm827, %v2273
      %2358 = vst [vmem:[%s272 + $0x1e0] sm:$0xff] %v2274
      %2359 = vst.msk [vmem:[%s272 + $0x1e8] sm:$0xff] %vm827, %v2275
      %2360 = vst [vmem:[%s272 + $0x1f0] sm:$0xff] %v2276
      %2361 = vst.msk [vmem:[%s272 + $0x1f8] sm:$0xff] %vm827, %v2277
      %2362 = vst [vmem:[%s272 + $0x200] sm:$0xff] %v2278
      %2363 = vst.msk [vmem:[%s272 + $0x208] sm:$0xff] %vm827, %v2279
      %2364 = vst [vmem:[%s272 + $0x210] sm:$0xff] %v2280
      %2365 = vst.msk [vmem:[%s272 + $0x218] sm:$0xff] %vm827, %v2281
      %2366 = vst [vmem:[%s272 + $0x220] sm:$0xff] %v2282
      %2367 = vst.msk [vmem:[%s272 + $0x228] sm:$0xff] %vm827, %v2283
      %2368 = vst [vmem:[%s272 + $0x230] sm:$0xff] %v2284
      %2369 = vst.msk [vmem:[%s272 + $0x238] sm:$0xff] %vm827, %v2285
      %2370 = vst [vmem:[%s272 + $0x240] sm:$0xff] %v2286
      %2371 = vst.msk [vmem:[%s272 + $0x248] sm:$0xff] %vm827, %v2287
      %2372 = vst [vmem:[%s272 + $0x250] sm:$0xff] %v2288
      %2373 = vst.msk [vmem:[%s272 + $0x258] sm:$0xff] %vm827, %v2289
      %2374 = vst [vmem:[%s272 + $0x260] sm:$0xff] %v2290
      %2375 = vst.msk [vmem:[%s272 + $0x268] sm:$0xff] %vm827, %v2291
      %2376 = vst [vmem:[%s272 + $0x270] sm:$0xff] %v2292
      %2377 = vst.msk [vmem:[%s272 + $0x278] sm:$0xff] %vm827, %v2293
      %2378 = vst [vmem:[%s272 + $0x280] sm:$0xff] %v2294
      %2379 = vst.msk [vmem:[%s272 + $0x288] sm:$0xff] %vm827, %v2295
      %2380 = vst [vmem:[%s272 + $0x290] sm:$0xff] %v2296
      %2381 = vst.msk [vmem:[%s272 + $0x298] sm:$0xff] %vm827, %v2297
      %s2382 = smul.u32 42, %s16
      %p2383 = scmp.lt.s32.totalorder %s2382, 83
      %s2384 = scalar_select %p2383, %s2382, 83
      %s2385 = smul.addr %s2384, 2
      %s2386 = smul.addr %s2385, 8
      %s2387 = scalar_lea.vmem %s5, %s2386
      // Predicated region
      $region41: #{tpu_custom_call.1} parent=39 // pred_check
        %p2388 = pneg %p154
      $region42: #{tpu_custom_call.1} parent=39 // pred_check_branch
        %2390 = sbr.rel (%p2388) target = $region44
      $region43: #{tpu_custom_call.1} parent=39 // pred_region
        %s2391 = smul.u32 42, %s16
      $region44: #{tpu_custom_call.1} parent=39 // pred_fallthru
        _
    $region40: #{tpu_custom_call.1} parent=5 // pred_fallthru
      _
    %p2392 = scmp.le.s32.totalorder 2, %s11
    // Predicated region
    $region45: #{tpu_custom_call.1} parent=5 // pred_check
      %p2393 = pneg %p2392
    $region46: #{tpu_custom_call.1} parent=5 // pred_check_branch
      %2395 = sbr.rel (%p2393) target = $region48
    $region47: #{tpu_custom_call.1} parent=5 // pred_region
      %s2396 = ssub.s32 %s11, 2
      // Predicated region
      $region49: #{tpu_custom_call.1} parent=47 // pred_check
        %p2397 = pneg %p160
      $region50: #{tpu_custom_call.1} parent=47 // pred_check_branch
        %2399 = sbr.rel (%p2397) target = $region52
      $region51: #{tpu_custom_call.1} parent=47 // pred_region
        %s2400 = smul.u32 42, %s17
        %p2401 = scmp.lt.s32.totalorder %s2400, 83
        %s2402 = scalar_select %p2401, %s2400, 83
        %s2403 = smul.addr %s2402, 2
        %s2404 = smul.addr %s2403, 8
        %s2405 = scalar_lea.vmem %s5, %s2404
      $region52: #{tpu_custom_call.1} parent=47 // pred_fallthru
        _
    $region48: #{tpu_custom_call.1} parent=5 // pred_fallthru
      _
  $region6: #{tpu_custom_call.1} parent=0 // loop_footer
    %s15 = sadd.s32 1, %s11
  $region7: #{tpu_custom_call.1} parent=0 // loop_footer_branch
    %10 = sbr.rel target = $region3
  $region8: #{tpu_custom_call.1} parent=0 // loop_exit
    _

</llo_original>
